<compile_context>
chip_gen: v6e
topology: v6e:2x2x1
jax: 0.10.0
libtpu: 0.0.40
codegen_flags: <defaults>
</compile_context>

<pallas_src>
import functools

import jax
import jax.numpy as jnp
from jax.experimental import pallas as pl
from jax.experimental.pallas import tpu as pltpu


def _round_up(n, m):
    return ((n + m - 1) // m) * m


def _bias_layout(hidden_dim, io_dim, head_pad):
    """Packed-bias segment offsets (128-lane aligned) for b1,b2,b3,b4,b5,b6."""
    widths = (hidden_dim, hidden_dim, head_pad, hidden_dim, hidden_dim, io_dim)
    offs = []
    cur = 0
    for w in widths:
        offs.append(cur)
        cur += _round_up(w, 128)
    total = offs[-1] + widths[-1]
    return tuple(offs), widths, total


def _pick_batch_tile(B, tb_max=1024):
    """Largest batch tile (<= tb_max, mult of 8) that avoids wrapper padding."""
    if B <= tb_max:
        return B                       # single grid step, block == full batch
    for tb in range(tb_max, 7, -8):    # largest multiple-of-8 exact divisor
        if B % tb == 0:
            return tb
    return min(tb_max, 512)            # fallback: wrapper pads to a multiple


def _vae_kernel(
    x_ref, eps_ref,
    w1_ref, w2_ref, w3_ref, w4_ref, w5_ref, w6_ref, b_ref,
    out_ref, mulv_ref,
    *, z_dim, hidden_dim, io_dim, head_pad, b_offs,
):
    # Static slices into the packed bias slab (all offsets are 128-aligned).
    b1 = b_ref[:, b_offs[0]:b_offs[0] + hidden_dim]
    b2 = b_ref[:, b_offs[1]:b_offs[1] + hidden_dim]
    b3 = b_ref[:, b_offs[2]:b_offs[2] + head_pad]
    b4 = b_ref[:, b_offs[3]:b_offs[3] + hidden_dim]
    b5 = b_ref[:, b_offs[4]:b_offs[4] + hidden_dim]
    b6 = b_ref[:, b_offs[5]:b_offs[5] + io_dim]

    x = x_ref[...]                                           # (TB, 784) f32

    # ---- encoder ----
    h = jnp.dot(x, w1_ref[...], preferred_element_type=jnp.float32) + b1
    h = jnp.maximum(h, 0.0)                                  # ReLU
    h = jnp.dot(h, w2_ref[...], preferred_element_type=jnp.float32) + b2
    h = jnp.maximum(h, 0.0)                                  # ReLU

    # Fused mu/log_var head: (hidden, head_pad) with cols [0,z)=mu,
    # [z,2z)=log_var, remaining cols zero-padded. One matmul, one lane-dense
    # (TB, head_pad) output slab.
    head = jnp.dot(h, w3_ref[...], preferred_element_type=jnp.float32) + b3

    lane = jax.lax.broadcasted_iota(jnp.int32, head.shape, 1)
    is_mu = lane < z_dim
    is_lv = (lane >= z_dim) & (lane < 2 * z_dim)
    # torch.clamp(log_var, min=-1e6): only the log_var lanes, via lane mask.
    head = jnp.where(is_lv, jnp.maximum(head, -1000000.0), head)
    mulv_ref[...] = head                                     # lane-dense output slab

    # ---- reparameterization trick, kept 128-lane dense ----
    # eps was zero-padded into the log_var lanes [z, 2z) in the wrapper, and
    # W4's rows are duplicated for the mu lanes and the eps*std lanes, so a
    # single MXU matmul below computes (mu + eps*std) @ W4 with no 8-lane
    # slices and no K=8 matmul.
    std = jnp.where(is_lv, jnp.exp(0.5 * head), 0.0)         # std on log_var lanes only
    dec_in = jnp.where(is_mu, head, 0.0) + eps_ref[...] * std

    # ---- decoder ----
    d = jnp.dot(dec_in, w4_ref[...], preferred_element_type=jnp.float32) + b4
    d = jnp.maximum(d, 0.0)                                  # ReLU
    d = jnp.dot(d, w5_ref[...], preferred_element_type=jnp.float32) + b5
    d = jnp.maximum(d, 0.0)                                  # ReLU
    # TODO(synk): nn.Dropout(0.5) is identity in eval mode; train-mode PRNG mask not implemented.
    logits = jnp.dot(d, w6_ref[...], preferred_element_type=jnp.float32) + b6
    # Exact sigmoid (output guaranteed in [0, 1]; the kernel is DMA-bound so
    # the exact divide costs nothing over the approx reciprocal).
    out_ref[...] = 1.0 / (1.0 + jnp.exp(-logits))


@jax.jit
def vae_forward(x_nchw, eps, params):
    """x_nchw: (B, 1, 28, 28) f32; eps: (B, z_dim) f32; params: dict of weights."""
    B = x_nchw.shape[0]
    io_dim = x_nchw.shape[1] * x_nchw.shape[2] * x_nchw.shape[3]
    z_dim = eps.shape[1]
    hidden_dim = params["w1"].shape[1]
    head_pad = params["w3"].shape[1]
    b_offs, _, b_total = _bias_layout(hidden_dim, io_dim, head_pad)

    x_flat = x_nchw.reshape(B, io_dim)                       # nn.Flatten()

    # Batch tile: large (better HBM-roofline utilization, fewer per-step
    # overheads) and a divisor of B whenever possible so no padding/slicing
    # copies are emitted in the wrapper.
    TB = _pick_batch_tile(B)
    B_pad = _round_up(B, TB)
    needs_pad = B_pad != B

    if needs_pad:
        x_flat = jnp.pad(x_flat, ((0, B_pad - B), (0, 0)))
    # eps zero-padded into the log_var lanes [z, 2z) of a head_pad-wide slab
    # (lane-dense reparam path); batch padding folded into the same pad.
    eps_p = jnp.pad(eps, ((0, B_pad - B), (z_dim, head_pad - 2 * z_dim)))

    grid = (B_pad // TB,)

    kernel = functools.partial(
        _vae_kernel,
        z_dim=z_dim, hidden_dim=hidden_dim, io_dim=io_dim,
        head_pad=head_pad, b_offs=b_offs,
    )

    def batch_spec(width):
        return pl.BlockSpec((TB, width), lambda i: (i, 0))

    def full_spec(shape):
        return pl.BlockSpec(shape, lambda i: (0, 0))         # weights stay resident

    weight_bytes = 4 * (io_dim * hidden_dim * 2 + hidden_dim * hidden_dim * 2
                        + hidden_dim * head_pad + head_pad * hidden_dim + b_total)
    cost = pl.CostEstimate(
        flops=2 * B_pad * (io_dim * hidden_dim * 2 + hidden_dim * hidden_dim * 2
                           + hidden_dim * head_pad + head_pad * hidden_dim),
        transcendentals=B_pad * (head_pad + io_dim),
        bytes_accessed=4 * B_pad * (2 * io_dim + 2 * head_pad) + weight_bytes,
    )

    recon, mulv = pl.pallas_call(
        kernel,
        out_shape=(
            jax.ShapeDtypeStruct((B_pad, io_dim), jnp.float32),
            jax.ShapeDtypeStruct((B_pad, head_pad), jnp.float32),
        ),
        grid=grid,
        in_specs=[
            batch_spec(io_dim),                 # x
            batch_spec(head_pad),               # eps (lane-padded)
            full_spec(params["w1"].shape),
            full_spec(params["w2"].shape),
            full_spec(params["w3"].shape),
            full_spec(params["w4"].shape),
            full_spec(params["w5"].shape),
            full_spec(params["w6"].shape),
            full_spec(params["b_packed"].shape),
        ],
        out_specs=(batch_spec(io_dim), batch_spec(head_pad)),
        compiler_params=pltpu.CompilerParams(
            dimension_semantics=("parallel",),   # v7x: 2 TCs split the batch grid
            vmem_limit_bytes=48 << 20,           # room for 1024-row tiles on v5e;
        ),                                       # well under v7x's 64 MiB physical
        cost_estimate=cost,
    )(x_flat, eps_p,
      params["w1"], params["w2"], params["w3"],
      params["w4"], params["w5"], params["w6"],
      params["b_packed"])

    if needs_pad:                                # only copy when padding happened
        recon = recon[:B]
        mulv = mulv[:B]
    recon = recon.reshape(-1, 1, 28, 28)         # z.reshape(-1, 1, 28, 28)
    mu = mulv[:, :z_dim]
    log_var = mulv[:, z_dim:2 * z_dim]
    return recon, mu, log_var


def init_params(key, input_output_dim, hidden_dim, z_dim):
    """Deterministic synthetic init; weights stored (in_dim, out_dim)."""
    ks = jax.random.split(key, 12)

    def lin(kw, kb, fan_in, fan_out):
        bound = 1.0 / (fan_in ** 0.5)
        w = jax.random.uniform(kw, (fan_in, fan_out), jnp.float32, -bound, bound)
        b = jax.random.uniform(kb, (1, fan_out), jnp.float32, -bound, bound)
        return w, b

    w1, b1 = lin(ks[0], ks[1], input_output_dim, hidden_dim)
    w2, b2 = lin(ks[2], ks[3], hidden_dim, hidden_dim)
    w3, b3 = lin(ks[4], ks[5], hidden_dim, 2 * z_dim)   # fused mu/log_var head
    w4, b4 = lin(ks[6], ks[7], z_dim, hidden_dim)
    w5, b5 = lin(ks[8], ks[9], hidden_dim, hidden_dim)
    w6, b6 = lin(ks[10], ks[11], hidden_dim, input_output_dim)

    # Pad the fused head to a lane-dense 128-column slab (zeros beyond 2*z).
    head_pad = max(128, _round_up(2 * z_dim, 128))
    w3p = jnp.zeros((hidden_dim, head_pad), jnp.float32).at[:, :2 * z_dim].set(w3)
    b3p = jnp.zeros((1, head_pad), jnp.float32).at[:, :2 * z_dim].set(b3)

    # Lane-dense reparam: W4 rows duplicated for the mu lanes [0, z) and the
    # eps*std lanes [z, 2z); remaining rows zero.  Then
    # dec_in @ w4p == (mu + eps*std) @ W4.
    w4p = (jnp.zeros((head_pad, hidden_dim), jnp.float32)
           .at[:z_dim, :].set(w4)
           .at[z_dim:2 * z_dim, :].set(w4))

    # Pack all biases into one array (128-aligned segments) -> single DMA.
    offs, _, total = _bias_layout(hidden_dim, input_output_dim, head_pad)
    b_packed = jnp.zeros((1, total), jnp.float32)
    for off, bb in zip(offs, (b1, b2, b3p, b4, b5, b6)):
        b_packed = b_packed.at[:, off:off + bb.shape[1]].set(bb)

    return {
        "w1": w1, "w2": w2, "w3": w3p, "w4": w4p, "w5": w5, "w6": w6,
        "b_packed": b_packed,
    }


if __name__ == "__main__":
    input_output_dim = 28 * 28   # forward reshapes to (-1, 1, 28, 28)
    hidden_dim = 32
    z_dim = 8
    batch = 2

    key = jax.random.PRNGKey(0)
    k_params, k_x, k_eps = jax.random.split(key, 3)

    params = init_params(k_params, input_output_dim, hidden_dim, z_dim)
    x = jax.random.uniform(k_x, (batch, 1, 28, 28), jnp.float32)       # NCHW input
    eps = jax.random.normal(k_eps, (batch, z_dim), jnp.float32)        # torch.randn_like(std)

    recon, mu, log_var = vae_forward(x, eps, params)
    jax.block_until_ready((recon, mu, log_var))

    assert recon.shape == (batch, 1, 28, 28)
    assert mu.shape == (batch, z_dim)
    assert log_var.shape == (batch, z_dim)
    assert bool(jnp.all(jnp.isfinite(recon)))
    assert bool(jnp.all((recon >= 0.0) & (recon <= 1.0)))
    print("KERNEL_OK")
</pallas_src>

<mosaic_0001>
module attributes {stable_mosaic.version = 11 : i64} {
  func.func @_vae_kernel(%arg0: i32, %arg1: memref<2x784xf32, #tpu.memory_space<vmem>>, %arg2: memref<2x128xf32, #tpu.memory_space<vmem>>, %arg3: memref<784x32xf32, #tpu.memory_space<vmem>>, %arg4: memref<32x32xf32, #tpu.memory_space<vmem>>, %arg5: memref<32x128xf32, #tpu.memory_space<vmem>>, %arg6: memref<128x32xf32, #tpu.memory_space<vmem>>, %arg7: memref<32x32xf32, #tpu.memory_space<vmem>>, %arg8: memref<32x784xf32, #tpu.memory_space<vmem>>, %arg9: memref<1x1424xf32, #tpu.memory_space<vmem>>, %arg10: memref<2x784xf32, #tpu.memory_space<vmem>>, %arg11: memref<2x128xf32, #tpu.memory_space<vmem>>) attributes {dimension_semantics = [#tpu.dimension_semantics<parallel>], iteration_bounds = array<i64: 1>, scalar_prefetch = 0 : i64, scratch_operands = 0 : i64, tpu.core_type = #tpu.core_type<tc>, window_params = [{transform_indices = @transform_0, window_bounds = array<i64: 2, 784>}, {transform_indices = @transform_1, window_bounds = array<i64: 2, 128>}, {pipeline_mode = #tpu.pipeline_mode<synchronous>, transform_indices = @transform_2, window_bounds = array<i64: 784, 32>}, {pipeline_mode = #tpu.pipeline_mode<synchronous>, transform_indices = @transform_3, window_bounds = array<i64: 32, 32>}, {pipeline_mode = #tpu.pipeline_mode<synchronous>, transform_indices = @transform_4, window_bounds = array<i64: 32, 128>}, {pipeline_mode = #tpu.pipeline_mode<synchronous>, transform_indices = @transform_5, window_bounds = array<i64: 128, 32>}, {pipeline_mode = #tpu.pipeline_mode<synchronous>, transform_indices = @transform_6, window_bounds = array<i64: 32, 32>}, {pipeline_mode = #tpu.pipeline_mode<synchronous>, transform_indices = @transform_7, window_bounds = array<i64: 32, 784>}, {pipeline_mode = #tpu.pipeline_mode<synchronous>, transform_indices = @transform_8, window_bounds = array<i64: 1, 1424>}, {transform_indices = @transform_9, window_bounds = array<i64: 2, 784>}, {transform_indices = @transform_10, window_bounds = array<i64: 2, 128>}]} {
    %c0 = arith.constant 0 : index
    %c0_0 = arith.constant 0 : index
    %0 = vector.load %arg9[%c0, %c0_0] : memref<1x1424xf32, #tpu.memory_space<vmem>>, vector<1x32xf32>
    %c0_1 = arith.constant 0 : index
    %c128 = arith.constant 128 : index
    %1 = vector.load %arg9[%c0_1, %c128] : memref<1x1424xf32, #tpu.memory_space<vmem>>, vector<1x32xf32>
    %c0_2 = arith.constant 0 : index
    %c256 = arith.constant 256 : index
    %2 = vector.load %arg9[%c0_2, %c256] : memref<1x1424xf32, #tpu.memory_space<vmem>>, vector<1x128xf32>
    %c0_3 = arith.constant 0 : index
    %c384 = arith.constant 384 : index
    %3 = vector.load %arg9[%c0_3, %c384] : memref<1x1424xf32, #tpu.memory_space<vmem>>, vector<1x32xf32>
    %c0_4 = arith.constant 0 : index
    %c512 = arith.constant 512 : index
    %4 = vector.load %arg9[%c0_4, %c512] : memref<1x1424xf32, #tpu.memory_space<vmem>>, vector<1x32xf32>
    %c0_5 = arith.constant 0 : index
    %c640 = arith.constant 640 : index
    %5 = vector.load %arg9[%c0_5, %c640] : memref<1x1424xf32, #tpu.memory_space<vmem>>, vector<1x784xf32>
    %c0_6 = arith.constant 0 : index
    %c0_7 = arith.constant 0 : index
    %6 = vector.load %arg1[%c0_6, %c0_7] : memref<2x784xf32, #tpu.memory_space<vmem>>, vector<2x784xf32>
    %c0_8 = arith.constant 0 : index
    %c0_9 = arith.constant 0 : index
    %7 = vector.load %arg3[%c0_8, %c0_9] : memref<784x32xf32, #tpu.memory_space<vmem>>, vector<784x32xf32>
    %cst = arith.constant dense<0.000000e+00> : vector<2x32xf32>
    %8 = tpu.matmul %6, %7, %cst {dimension_numbers = #tpu.dot_dimension_numbers<[1], [0], [0], [1], [0, 0, 1, 1], [], []>} : vector<2x784xf32>, vector<784x32xf32>, vector<2x32xf32> -> vector<2x32xf32>
    %9 = vector.broadcast %0 : vector<1x32xf32> to vector<2x32xf32>
    %10 = arith.addf %8, %9 : vector<2x32xf32>
    %cst_10 = arith.constant 0.000000e+00 : f32
    %11 = vector.broadcast %cst_10 : f32 to vector<2x32xf32>
    %12 = arith.maximumf %10, %11 : vector<2x32xf32>
    %c0_11 = arith.constant 0 : index
    %c0_12 = arith.constant 0 : index
    %13 = vector.load %arg4[%c0_11, %c0_12] : memref<32x32xf32, #tpu.memory_space<vmem>>, vector<32x32xf32>
    %cst_13 = arith.constant dense<0.000000e+00> : vector<2x32xf32>
    %14 = tpu.matmul %12, %13, %cst_13 {dimension_numbers = #tpu.dot_dimension_numbers<[1], [0], [0], [1], [0, 0, 1, 1], [], []>} : vector<2x32xf32>, vector<32x32xf32>, vector<2x32xf32> -> vector<2x32xf32>
    %15 = vector.broadcast %1 : vector<1x32xf32> to vector<2x32xf32>
    %16 = arith.addf %14, %15 : vector<2x32xf32>
    %cst_14 = arith.constant 0.000000e+00 : f32
    %17 = vector.broadcast %cst_14 : f32 to vector<2x32xf32>
    %18 = arith.maximumf %16, %17 : vector<2x32xf32>
    %c0_15 = arith.constant 0 : index
    %c0_16 = arith.constant 0 : index
    %19 = vector.load %arg5[%c0_15, %c0_16] : memref<32x128xf32, #tpu.memory_space<vmem>>, vector<32x128xf32>
    %cst_17 = arith.constant dense<0.000000e+00> : vector<2x128xf32>
    %20 = tpu.matmul %18, %19, %cst_17 {dimension_numbers = #tpu.dot_dimension_numbers<[1], [0], [0], [1], [0, 0, 1, 1], [], []>} : vector<2x32xf32>, vector<32x128xf32>, vector<2x128xf32> -> vector<2x128xf32>
    %21 = vector.broadcast %2 : vector<1x128xf32> to vector<2x128xf32>
    %22 = arith.addf %20, %21 : vector<2x128xf32>
    %23 = tpu.iota {dimensions = array<i32: 1>} : vector<2x128xi32>
    %c8_i32 = arith.constant 8 : i32
    %24 = vector.broadcast %c8_i32 : i32 to vector<2x128xi32>
    %25 = arith.cmpi slt, %23, %24 : vector<2x128xi32>
    %c8_i32_18 = arith.constant 8 : i32
    %26 = vector.broadcast %c8_i32_18 : i32 to vector<2x128xi32>
    %27 = arith.cmpi sge, %23, %26 : vector<2x128xi32>
    %c16_i32 = arith.constant 16 : i32
    %28 = vector.broadcast %c16_i32 : i32 to vector<2x128xi32>
    %29 = arith.cmpi slt, %23, %28 : vector<2x128xi32>
    %30 = arith.andi %27, %29 : vector<2x128xi1>
    %cst_19 = arith.constant -1.000000e+06 : f32
    %31 = vector.broadcast %cst_19 : f32 to vector<2x128xf32>
    %32 = arith.maximumf %22, %31 : vector<2x128xf32>
    %33 = arith.select %30, %32, %22 : vector<2x128xi1>, vector<2x128xf32>
    %c0_20 = arith.constant 0 : index
    %c0_21 = arith.constant 0 : index
    %34 = vector.load %arg11[%c0_20, %c0_21] : memref<2x128xf32, #tpu.memory_space<vmem>>, vector<2x128xf32>
    tpu.vector_store %arg11[%c0_20, %c0_21], %33 {strides = array<i32>} : memref<2x128xf32, #tpu.memory_space<vmem>>, vector<2x128xf32>,
    %cst_22 = arith.constant 5.000000e-01 : f32
    %35 = vector.broadcast %cst_22 : f32 to vector<2x128xf32>
    %36 = arith.mulf %35, %33 : vector<2x128xf32>
    %37 = math.exp %36 : vector<2x128xf32>
    %cst_23 = arith.constant 0.000000e+00 : f32
    %38 = vector.broadcast %cst_23 : f32 to vector<2x128xf32>
    %39 = arith.select %30, %37, %38 : vector<2x128xi1>, vector<2x128xf32>
    %cst_24 = arith.constant 0.000000e+00 : f32
    %40 = vector.broadcast %cst_24 : f32 to vector<2x128xf32>
    %41 = arith.select %25, %33, %40 : vector<2x128xi1>, vector<2x128xf32>
    %c0_25 = arith.constant 0 : index
    %c0_26 = arith.constant 0 : index
    %42 = vector.load %arg2[%c0_25, %c0_26] : memref<2x128xf32, #tpu.memory_space<vmem>>, vector<2x128xf32>
    %43 = arith.mulf %42, %39 : vector<2x128xf32>
    %44 = arith.addf %41, %43 : vector<2x128xf32>
    %c0_27 = arith.constant 0 : index
    %c0_28 = arith.constant 0 : index
    %45 = vector.load %arg6[%c0_27, %c0_28] : memref<128x32xf32, #tpu.memory_space<vmem>>, vector<128x32xf32>
    %cst_29 = arith.constant dense<0.000000e+00> : vector<2x32xf32>
    %46 = tpu.matmul %44, %45, %cst_29 {dimension_numbers = #tpu.dot_dimension_numbers<[1], [0], [0], [1], [0, 0, 1, 1], [], []>} : vector<2x128xf32>, vector<128x32xf32>, vector<2x32xf32> -> vector<2x32xf32>
    %47 = vector.broadcast %3 : vector<1x32xf32> to vector<2x32xf32>
    %48 = arith.addf %46, %47 : vector<2x32xf32>
    %cst_30 = arith.constant 0.000000e+00 : f32
    %49 = vector.broadcast %cst_30 : f32 to vector<2x32xf32>
    %50 = arith.maximumf %48, %49 : vector<2x32xf32>
    %c0_31 = arith.constant 0 : index
    %c0_32 = arith.constant 0 : index
    %51 = vector.load %arg7[%c0_31, %c0_32] : memref<32x32xf32, #tpu.memory_space<vmem>>, vector<32x32xf32>
    %cst_33 = arith.constant dense<0.000000e+00> : vector<2x32xf32>
    %52 = tpu.matmul %50, %51, %cst_33 {dimension_numbers = #tpu.dot_dimension_numbers<[1], [0], [0], [1], [0, 0, 1, 1], [], []>} : vector<2x32xf32>, vector<32x32xf32>, vector<2x32xf32> -> vector<2x32xf32>
    %53 = vector.broadcast %4 : vector<1x32xf32> to vector<2x32xf32>
    %54 = arith.addf %52, %53 : vector<2x32xf32>
    %cst_34 = arith.constant 0.000000e+00 : f32
    %55 = vector.broadcast %cst_34 : f32 to vector<2x32xf32>
    %56 = arith.maximumf %54, %55 : vector<2x32xf32>
    %c0_35 = arith.constant 0 : index
    %c0_36 = arith.constant 0 : index
    %57 = vector.load %arg8[%c0_35, %c0_36] : memref<32x784xf32, #tpu.memory_space<vmem>>, vector<32x784xf32>
    %cst_37 = arith.constant dense<0.000000e+00> : vector<2x784xf32>
    %58 = tpu.matmul %56, %57, %cst_37 {dimension_numbers = #tpu.dot_dimension_numbers<[1], [0], [0], [1], [0, 0, 1, 1], [], []>} : vector<2x32xf32>, vector<32x784xf32>, vector<2x784xf32> -> vector<2x784xf32>
    %59 = vector.broadcast %5 : vector<1x784xf32> to vector<2x784xf32>
    %60 = arith.addf %58, %59 : vector<2x784xf32>
    %cst_38 = arith.constant 0.000000e+00 : f32
    %61 = vector.broadcast %cst_38 : f32 to vector<2x784xf32>
    %62 = arith.subf %61, %60 : vector<2x784xf32>
    %63 = math.exp %62 : vector<2x784xf32>
    %cst_39 = arith.constant 1.000000e+00 : f32
    %64 = vector.broadcast %cst_39 : f32 to vector<2x784xf32>
    %65 = arith.addf %64, %63 : vector<2x784xf32>
    %cst_40 = arith.constant 1.000000e+00 : f32
    %66 = vector.broadcast %cst_40 : f32 to vector<2x784xf32>
    %67 = arith.divf %66, %65 : vector<2x784xf32>
    %c0_41 = arith.constant 0 : index
    %c0_42 = arith.constant 0 : index
    %68 = vector.load %arg10[%c0_41, %c0_42] : memref<2x784xf32, #tpu.memory_space<vmem>>, vector<2x784xf32>
    tpu.vector_store %arg10[%c0_41, %c0_42], %67 {strides = array<i32>} : memref<2x784xf32, #tpu.memory_space<vmem>>, vector<2x784xf32>,
    return
  }
  func.func @transform_0(%arg0: i32) -> (i32, i32) {
    %c0_i32 = arith.constant 0 : i32
    %c0_i32_0 = arith.constant 0 : i32
    return %arg0, %c0_i32 : i32, i32
  }
  func.func @transform_1(%arg0: i32) -> (i32, i32) {
    %c0_i32 = arith.constant 0 : i32
    %c0_i32_0 = arith.constant 0 : i32
    return %arg0, %c0_i32 : i32, i32
  }
  func.func @transform_2(%arg0: i32) -> (i32, i32) {
    %c0_i32 = arith.constant 0 : i32
    %c0_i32_0 = arith.constant 0 : i32
    %c0_i32_1 = arith.constant 0 : i32
    return %c0_i32, %c0_i32_0 : i32, i32
  }
  func.func @transform_3(%arg0: i32) -> (i32, i32) {
    %c0_i32 = arith.constant 0 : i32
    %c0_i32_0 = arith.constant 0 : i32
    %c0_i32_1 = arith.constant 0 : i32
    return %c0_i32, %c0_i32_0 : i32, i32
  }
  func.func @transform_4(%arg0: i32) -> (i32, i32) {
    %c0_i32 = arith.constant 0 : i32
    %c0_i32_0 = arith.constant 0 : i32
    %c0_i32_1 = arith.constant 0 : i32
    return %c0_i32, %c0_i32_0 : i32, i32
  }
  func.func @transform_5(%arg0: i32) -> (i32, i32) {
    %c0_i32 = arith.constant 0 : i32
    %c0_i32_0 = arith.constant 0 : i32
    %c0_i32_1 = arith.constant 0 : i32
    return %c0_i32, %c0_i32_0 : i32, i32
  }
  func.func @transform_6(%arg0: i32) -> (i32, i32) {
    %c0_i32 = arith.constant 0 : i32
    %c0_i32_0 = arith.constant 0 : i32
    %c0_i32_1 = arith.constant 0 : i32
    return %c0_i32, %c0_i32_0 : i32, i32
  }
  func.func @transform_7(%arg0: i32) -> (i32, i32) {
    %c0_i32 = arith.constant 0 : i32
    %c0_i32_0 = arith.constant 0 : i32
    %c0_i32_1 = arith.constant 0 : i32
    return %c0_i32, %c0_i32_0 : i32, i32
  }
  func.func @transform_8(%arg0: i32) -> (i32, i32) {
    %c0_i32 = arith.constant 0 : i32
    %c0_i32_0 = arith.constant 0 : i32
    %c0_i32_1 = arith.constant 0 : i32
    return %c0_i32, %c0_i32_0 : i32, i32
  }
  func.func @transform_9(%arg0: i32) -> (i32, i32) {
    %c0_i32 = arith.constant 0 : i32
    %c0_i32_0 = arith.constant 0 : i32
    return %arg0, %c0_i32 : i32, i32
  }
  func.func @transform_10(%arg0: i32) -> (i32, i32) {
    %c0_i32 = arith.constant 0 : i32
    %c0_i32_0 = arith.constant 0 : i32
    return %arg0, %c0_i32 : i32, i32
  }
}

</mosaic_0001>

<llo_original>
// kernel: vae_forward.1
$region0: #{vae_forward.1}
  #allocation0 [shape = 'u32[]', space=smem, size = 0x4, offset = 0x4, fixed_abs, tag = 'smem constant byte address 0x4 - core index']
  #allocation1 [shape = 'u32[144,128]{1,0:T(1,128)}', space=vmem, size = 0x12000, scoped, tag = 'internal scratch']
  %s0 = inlined_call_operand.vmem [shape: f32[2,784], index: 0, kind: input, shape index: {}]
  %s1 = inlined_call_operand.vmem [shape: f32[2,128], index: 1, kind: input, shape index: {}]
  %s2 = inlined_call_operand.vmem [shape: f32[784,32], index: 2, kind: input, shape index: {}]
  %s3 = inlined_call_operand.vmem [shape: f32[32,32], index: 3, kind: input, shape index: {}]
  %s4 = inlined_call_operand.vmem [shape: f32[32,128], index: 4, kind: input, shape index: {}]
  %s5 = inlined_call_operand.vmem [shape: f32[128,32], index: 5, kind: input, shape index: {}]
  %s6 = inlined_call_operand.vmem [shape: f32[32,32], index: 6, kind: input, shape index: {}]
  %s7 = inlined_call_operand.vmem [shape: f32[32,784], index: 7, kind: input, shape index: {}]
  %s8 = inlined_call_operand.vmem [shape: f32[1,1424], index: 8, kind: input, shape index: {}]
  %s9 = inlined_call_operand.vmem [shape: f32[2,784], index: 9, kind: output, shape index: {0}]
  %s10 = inlined_call_operand.vmem [shape: f32[2,128], index: 10, kind: output, shape index: {1}]
  %11 = xla_tuple %s9, %s10
  %s12 = sld [smem:[#allocation0]]
  $region54: #{vae_forward.1} parent=0
    _
  %s14 = ssub.s32 1, %s12
  %s15 = scalar_select 0, %s14, %s12
  // Predicated region
  $region2: #{vae_forward.1} parent=0 // pred_check
    _
  $region3: #{vae_forward.1} parent=0 // pred_check_branch
    %17 = sbr.rel (0) target = $region5
  $region4: #{vae_forward.1} parent=0 // pred_region
    _
  $region5: #{vae_forward.1} parent=0 // pred_fallthru
    _
  // Predicated region
  $region6: #{vae_forward.1} parent=0 // pred_check
    _
  $region7: #{vae_forward.1} parent=0 // pred_check_branch
    %19 = sbr.rel (0) target = $region9
  $region8: #{vae_forward.1} parent=0 // pred_region
    _
  $region9: #{vae_forward.1} parent=0 // pred_fallthru
    _
  // Predicated region
  $region10: #{vae_forward.1} parent=0 // pred_check
    _
  $region11: #{vae_forward.1} parent=0 // pred_check_branch
    %21 = sbr.rel (0) target = $region13
  $region12: #{vae_forward.1} parent=0 // pred_region
    _
  $region13: #{vae_forward.1} parent=0 // pred_fallthru
    _
  // Predicated region
  $region14: #{vae_forward.1} parent=0 // pred_check
    _
  $region15: #{vae_forward.1} parent=0 // pred_check_branch
    %23 = sbr.rel (0) target = $region17
  $region16: #{vae_forward.1} parent=0 // pred_region
    _
  $region17: #{vae_forward.1} parent=0 // pred_fallthru
    _
  // Predicated region
  $region18: #{vae_forward.1} parent=0 // pred_check
    _
  $region19: #{vae_forward.1} parent=0 // pred_check_branch
    %25 = sbr.rel (0) target = $region21
  $region20: #{vae_forward.1} parent=0 // pred_region
    _
  $region21: #{vae_forward.1} parent=0 // pred_fallthru
    _
  // Predicated region
  $region22: #{vae_forward.1} parent=0 // pred_check
    _
  $region23: #{vae_forward.1} parent=0 // pred_check_branch
    %27 = sbr.rel (0) target = $region25
  $region24: #{vae_forward.1} parent=0 // pred_region
    _
  $region25: #{vae_forward.1} parent=0 // pred_fallthru
    _
  // Predicated region
  $region26: #{vae_forward.1} parent=0 // pred_check
    _
  $region27: #{vae_forward.1} parent=0 // pred_check_branch
    %29 = sbr.rel (0) target = $region29
  $region28: #{vae_forward.1} parent=0 // pred_region
    _
  $region29: #{vae_forward.1} parent=0 // pred_fallthru
    _
  // Predicated region
  $region30: #{vae_forward.1} parent=0 // pred_check
    _
  $region31: #{vae_forward.1} parent=0 // pred_check_branch
    %31 = sbr.rel (0) target = $region33
  $region32: #{vae_forward.1} parent=0 // pred_region
    _
  $region33: #{vae_forward.1} parent=0 // pred_fallthru
    _
  // Predicated region
  $region34: #{vae_forward.1} parent=0 // pred_check
    _
  $region35: #{vae_forward.1} parent=0 // pred_check_branch
    %33 = sbr.rel (0) target = $region37
  $region36: #{vae_forward.1} parent=0 // pred_region
    _
  $region37: #{vae_forward.1} parent=0 // pred_fallthru
    _
  %v34 = vld [vmem:[%s8] sm:$0x1]
  %v35 = vld [vmem:[%s8 + $0x1] sm:$0x1]
  %v36 = vld [vmem:[%s8 + $0x2] sm:$0x1]
  %v37 = vld [vmem:[%s8 + $0x3] sm:$0x1]
  %v38 = vld [vmem:[%s8 + $0x4] sm:$0x1]
  %v39 = vld [vmem:[%s8 + $0x5] sm:$0x7f]
  %v40 = vld [vmem:[%s0] sm:$0xff]
  %v41 = vld [vmem:[%s0 + $0x8] sm:$0x3f]
  %v42 = vld [vmem:[%s2] sm:$0xff]
  %v43 = vld [vmem:[%s2 + $0x8] sm:$0xff]
  %v44 = vld [vmem:[%s2 + $0x10] sm:$0xff]
  %v45 = vld [vmem:[%s2 + $0x18] sm:$0xff]
  %v46 = vld [vmem:[%s2 + $0x20] sm:$0xff]
  %v47 = vld [vmem:[%s2 + $0x28] sm:$0xff]
  %v48 = vld [vmem:[%s2 + $0x30] sm:$0xff]
  %v49 = vld [vmem:[%s2 + $0x38] sm:$0xff]
  %v50 = vld [vmem:[%s2 + $0x40] sm:$0xff]
  %v51 = vld [vmem:[%s2 + $0x48] sm:$0xff]
  %v52 = vld [vmem:[%s2 + $0x50] sm:$0xff]
  %v53 = vld [vmem:[%s2 + $0x58] sm:$0xff]
  %v54 = vld [vmem:[%s2 + $0x60] sm:$0xff]
  %v55 = vld [vmem:[%s2 + $0x68] sm:$0xff]
  %v56 = vld [vmem:[%s2 + $0x70] sm:$0xff]
  %v57 = vld [vmem:[%s2 + $0x78] sm:$0xff]
  %v58 = vld [vmem:[%s2 + $0x80] sm:$0xff]
  %v59 = vld [vmem:[%s2 + $0x88] sm:$0xff]
  %v60 = vld [vmem:[%s2 + $0x90] sm:$0xff]
  %v61 = vld [vmem:[%s2 + $0x98] sm:$0xff]
  %v62 = vld [vmem:[%s2 + $0xa0] sm:$0xff]
  %v63 = vld [vmem:[%s2 + $0xa8] sm:$0xff]
  %v64 = vld [vmem:[%s2 + $0xb0] sm:$0xff]
  %v65 = vld [vmem:[%s2 + $0xb8] sm:$0xff]
  %v66 = vld [vmem:[%s2 + $0xc0] sm:$0xff]
  %v67 = vld [vmem:[%s2 + $0xc8] sm:$0xff]
  %v68 = vld [vmem:[%s2 + $0xd0] sm:$0xff]
  %v69 = vld [vmem:[%s2 + $0xd8] sm:$0xff]
  %v70 = vld [vmem:[%s2 + $0xe0] sm:$0xff]
  %v71 = vld [vmem:[%s2 + $0xe8] sm:$0xff]
  %v72 = vld [vmem:[%s2 + $0xf0] sm:$0xff]
  %v73 = vld [vmem:[%s2 + $0xf8] sm:$0xff]
  %v74 = vld [vmem:[%s2 + $0x100] sm:$0xff]
  %v75 = vld [vmem:[%s2 + $0x108] sm:$0xff]
  %v76 = vld [vmem:[%s2 + $0x110] sm:$0xff]
  %v77 = vld [vmem:[%s2 + $0x118] sm:$0xff]
  %v78 = vld [vmem:[%s2 + $0x120] sm:$0xff]
  %v79 = vld [vmem:[%s2 + $0x128] sm:$0xff]
  %v80 = vld [vmem:[%s2 + $0x130] sm:$0xff]
  %v81 = vld [vmem:[%s2 + $0x138] sm:$0xff]
  %v82 = vld [vmem:[%s2 + $0x140] sm:$0xff]
  %v83 = vld [vmem:[%s2 + $0x148] sm:$0xff]
  %v84 = vld [vmem:[%s2 + $0x150] sm:$0xff]
  %v85 = vld [vmem:[%s2 + $0x158] sm:$0xff]
  %v86 = vld [vmem:[%s2 + $0x160] sm:$0xff]
  %v87 = vld [vmem:[%s2 + $0x168] sm:$0xff]
  %v88 = vld [vmem:[%s2 + $0x170] sm:$0xff]
  %v89 = vld [vmem:[%s2 + $0x178] sm:$0xff]
  %v90 = vld [vmem:[%s2 + $0x180] sm:$0xff]
  %v91 = vld [vmem:[%s2 + $0x188] sm:$0xff]
  %v92 = vld [vmem:[%s2 + $0x190] sm:$0xff]
  %v93 = vld [vmem:[%s2 + $0x198] sm:$0xff]
  %v94 = vld [vmem:[%s2 + $0x1a0] sm:$0xff]
  %v95 = vld [vmem:[%s2 + $0x1a8] sm:$0xff]
  %v96 = vld [vmem:[%s2 + $0x1b0] sm:$0xff]
  %v97 = vld [vmem:[%s2 + $0x1b8] sm:$0xff]
  %v98 = vld [vmem:[%s2 + $0x1c0] sm:$0xff]
  %v99 = vld [vmem:[%s2 + $0x1c8] sm:$0xff]
  %v100 = vld [vmem:[%s2 + $0x1d0] sm:$0xff]
  %v101 = vld [vmem:[%s2 + $0x1d8] sm:$0xff]
  %v102 = vld [vmem:[%s2 + $0x1e0] sm:$0xff]
  %v103 = vld [vmem:[%s2 + $0x1e8] sm:$0xff]
  %v104 = vld [vmem:[%s2 + $0x1f0] sm:$0xff]
  %v105 = vld [vmem:[%s2 + $0x1f8] sm:$0xff]
  %v106 = vld [vmem:[%s2 + $0x200] sm:$0xff]
  %v107 = vld [vmem:[%s2 + $0x208] sm:$0xff]
  %v108 = vld [vmem:[%s2 + $0x210] sm:$0xff]
  %v109 = vld [vmem:[%s2 + $0x218] sm:$0xff]
  %v110 = vld [vmem:[%s2 + $0x220] sm:$0xff]
  %v111 = vld [vmem:[%s2 + $0x228] sm:$0xff]
  %v112 = vld [vmem:[%s2 + $0x230] sm:$0xff]
  %v113 = vld [vmem:[%s2 + $0x238] sm:$0xff]
  %v114 = vld [vmem:[%s2 + $0x240] sm:$0xff]
  %v115 = vld [vmem:[%s2 + $0x248] sm:$0xff]
  %v116 = vld [vmem:[%s2 + $0x250] sm:$0xff]
  %v117 = vld [vmem:[%s2 + $0x258] sm:$0xff]
  %v118 = vld [vmem:[%s2 + $0x260] sm:$0xff]
  %v119 = vld [vmem:[%s2 + $0x268] sm:$0xff]
  %v120 = vld [vmem:[%s2 + $0x270] sm:$0xff]
  %v121 = vld [vmem:[%s2 + $0x278] sm:$0xff]
  %v122 = vld [vmem:[%s2 + $0x280] sm:$0xff]
  %v123 = vld [vmem:[%s2 + $0x288] sm:$0xff]
  %v124 = vld [vmem:[%s2 + $0x290] sm:$0xff]
  %v125 = vld [vmem:[%s2 + $0x298] sm:$0xff]
  %v126 = vld [vmem:[%s2 + $0x2a0] sm:$0xff]
  %v127 = vld [vmem:[%s2 + $0x2a8] sm:$0xff]
  %v128 = vld [vmem:[%s2 + $0x2b0] sm:$0xff]
  %v129 = vld [vmem:[%s2 + $0x2b8] sm:$0xff]
  %v130 = vld [vmem:[%s2 + $0x2c0] sm:$0xff]
  %v131 = vld [vmem:[%s2 + $0x2c8] sm:$0xff]
  %v132 = vld [vmem:[%s2 + $0x2d0] sm:$0xff]
  %v133 = vld [vmem:[%s2 + $0x2d8] sm:$0xff]
  %v134 = vld [vmem:[%s2 + $0x2e0] sm:$0xff]
  %v135 = vld [vmem:[%s2 + $0x2e8] sm:$0xff]
  %v136 = vld [vmem:[%s2 + $0x2f0] sm:$0xff]
  %v137 = vld [vmem:[%s2 + $0x2f8] sm:$0xff]
  %v138 = vld [vmem:[%s2 + $0x300] sm:$0xff]
  %v139 = vld [vmem:[%s2 + $0x308] sm:$0xff]
  %v141 = vlaneseq
  %v142 = vshrl.u32 %v141, 7
  %v143 = vsub.s32 0, %v142
  %v144 = vrot.slane %v34, %v143
  %v148 = vcombine.high %v40, %v40
  %v150 = vunpack.c.l.s4 1983009808
  %v151 = vunpack.c.0.s8 %v150
  %v152 = vlaneseq
  %v153 = vshrl.u32 %v152, 7
  %v154 = vsub.s32 %v151, %v153
  %v155 = vrot.slane %v40, %v154
  %v157 = vunpack.c.l.s4 1983009808
  %v158 = vunpack.c.0.s8 %v157
  %v159 = vlaneseq
  %v160 = vshrl.u32 %v159, 7
  %v161 = vsub.s32 %v158, %v160
  %v162 = vrot.slane %v148, %v161
  %v163 = vcombine.high %v155, %v155
  %v164 = vcombine.high %v162, %v162
  %v165 = vcombine.high %v41, %v41
  %v167 = vunpack.c.l.s4 1983009808
  %v168 = vunpack.c.0.s8 %v167
  %v169 = vlaneseq
  %v170 = vshrl.u32 %v169, 7
  %v171 = vsub.s32 %v168, %v170
  %v172 = vrot.slane %v41, %v171
  %v174 = vunpack.c.l.s4 1983009808
  %v175 = vunpack.c.0.s8 %v174
  %v176 = vlaneseq
  %v177 = vshrl.u32 %v176, 7
  %v178 = vsub.s32 %v175, %v177
  %v179 = vrot.slane %v165, %v178
  %v180 = vcombine.high %v172, %v172
  %vm187 = vcmask 130048
  %v188 = vsel %vm187, %v179, 0
  %190 = vmatprep.subr.mxu0 0.0
  %191 = vmatpush1.msra.mxu0 %v57
  %192 = vmatprep.subr.mxu0 0.0
  %193 = vmatpush1.msra.mxu0 %v56
  %194 = vmatprep.subr.mxu0 0.0
  %195 = vmatpush1.msra.mxu0 %v55
  %196 = vmatprep.subr.mxu0 0.0
  %197 = vmatpush1.msra.mxu0 %v54
  %198 = vmatprep.subr.mxu0 0.0
  %199 = vmatpush1.msra.mxu0 %v53
  %200 = vmatprep.subr.mxu0 0.0
  %201 = vmatpush1.msra.mxu0 %v52
  %202 = vmatprep.subr.mxu0 0.0
  %203 = vmatpush1.msra.mxu0 %v51
  %204 = vmatprep.subr.mxu0 0.0
  %205 = vmatpush1.msra.mxu0 %v50
  %206 = vmatprep.subr.mxu0 0.0
  %207 = vmatpush1.msra.mxu0 %v49
  %208 = vmatprep.subr.mxu0 0.0
  %209 = vmatpush1.msra.mxu0 %v48
  %210 = vmatprep.subr.mxu0 0.0
  %211 = vmatpush1.msra.mxu0 %v47
  %212 = vmatprep.subr.mxu0 0.0
  %213 = vmatpush1.msra.mxu0 %v46
  %214 = vmatprep.subr.mxu0 0.0
  %215 = vmatpush1.msra.mxu0 %v45
  %216 = vmatprep.subr.mxu0 0.0
  %217 = vmatpush1.msra.mxu0 %v44
  %218 = vmatprep.subr.mxu0 0.0
  %219 = vmatpush1.msra.mxu0 %v43
  %220 = vmatprep.subr.mxu0 0.0
  %221 = vmatpush1.msra.mxu0 %v42
  %222 = vmatprep.subr.mxu0 0.0
  %223 = vmatpush2.msra.mxu0 %v73
  %224 = vmatprep.subr.mxu0 0.0
  %225 = vmatpush2.msra.mxu0 %v72
  %226 = vmatprep.subr.mxu0 0.0
  %227 = vmatpush2.msra.mxu0 %v71
  %228 = vmatprep.subr.mxu0 0.0
  %229 = vmatpush2.msra.mxu0 %v70
  %230 = vmatprep.subr.mxu0 0.0
  %231 = vmatpush2.msra.mxu0 %v69
  %232 = vmatprep.subr.mxu0 0.0
  %233 = vmatpush2.msra.mxu0 %v68
  %234 = vmatprep.subr.mxu0 0.0
  %235 = vmatpush2.msra.mxu0 %v67
  %236 = vmatprep.subr.mxu0 0.0
  %237 = vmatpush2.msra.mxu0 %v66
  %238 = vmatprep.subr.mxu0 0.0
  %239 = vmatpush2.msra.mxu0 %v65
  %240 = vmatprep.subr.mxu0 0.0
  %241 = vmatpush2.msra.mxu0 %v64
  %242 = vmatprep.subr.mxu0 0.0
  %243 = vmatpush2.msra.mxu0 %v63
  %244 = vmatprep.subr.mxu0 0.0
  %245 = vmatpush2.msra.mxu0 %v62
  %246 = vmatprep.subr.mxu0 0.0
  %247 = vmatpush2.msra.mxu0 %v61
  %248 = vmatprep.subr.mxu0 0.0
  %249 = vmatpush2.msra.mxu0 %v60
  %250 = vmatprep.subr.mxu0 0.0
  %251 = vmatpush2.msra.mxu0 %v59
  %252 = vmatprep.subr.mxu0 0.0
  %253 = vmatpush2.msra.mxu0 %v58
  %254 = vmatprep.mubr.f32.mxu0 %v163
  %255 = vmatmul.mubr.f32.gmra.mxu0 %v155
  %v256 = vpop.f32.mrf.mxu0
  %v257 = vadd.f32 %v144, %v256
  %v258 = vpop.f32.mrf.mxu0
  %259 = vdwg.mxu0
  %260 = vmatprep.subr.mxu0 0.0
  %261 = vmatpush1.msra.mxu0 %v89
  %262 = vmatprep.subr.mxu0 0.0
  %263 = vmatpush1.msra.mxu0 %v88
  %264 = vmatprep.subr.mxu0 0.0
  %265 = vmatpush1.msra.mxu0 %v87
  %266 = vmatprep.subr.mxu0 0.0
  %267 = vmatpush1.msra.mxu0 %v86
  %268 = vmatprep.subr.mxu0 0.0
  %269 = vmatpush1.msra.mxu0 %v85
  %270 = vmatprep.subr.mxu0 0.0
  %271 = vmatpush1.msra.mxu0 %v84
  %272 = vmatprep.subr.mxu0 0.0
  %273 = vmatpush1.msra.mxu0 %v83
  %274 = vmatprep.subr.mxu0 0.0
  %275 = vmatpush1.msra.mxu0 %v82
  %276 = vmatprep.subr.mxu0 0.0
  %277 = vmatpush1.msra.mxu0 %v81
  %278 = vmatprep.subr.mxu0 0.0
  %279 = vmatpush1.msra.mxu0 %v80
  %280 = vmatprep.subr.mxu0 0.0
  %281 = vmatpush1.msra.mxu0 %v79
  %282 = vmatprep.subr.mxu0 0.0
  %283 = vmatpush1.msra.mxu0 %v78
  %284 = vmatprep.subr.mxu0 0.0
  %285 = vmatpush1.msra.mxu0 %v77
  %286 = vmatprep.subr.mxu0 0.0
  %287 = vmatpush1.msra.mxu0 %v76
  %288 = vmatprep.subr.mxu0 0.0
  %289 = vmatpush1.msra.mxu0 %v75
  %290 = vmatprep.subr.mxu0 0.0
  %291 = vmatpush1.msra.mxu0 %v74
  %292 = vmatprep.subr.mxu0 0.0
  %293 = vmatpush2.msra.mxu0 %v105
  %294 = vmatprep.subr.mxu0 0.0
  %295 = vmatpush2.msra.mxu0 %v104
  %296 = vmatprep.subr.mxu0 0.0
  %297 = vmatpush2.msra.mxu0 %v103
  %298 = vmatprep.subr.mxu0 0.0
  %299 = vmatpush2.msra.mxu0 %v102
  %300 = vmatprep.subr.mxu0 0.0
  %301 = vmatpush2.msra.mxu0 %v101
  %302 = vmatprep.subr.mxu0 0.0
  %303 = vmatpush2.msra.mxu0 %v100
  %304 = vmatprep.subr.mxu0 0.0
  %305 = vmatpush2.msra.mxu0 %v99
  %306 = vmatprep.subr.mxu0 0.0
  %307 = vmatpush2.msra.mxu0 %v98
  %308 = vmatprep.subr.mxu0 0.0
  %309 = vmatpush2.msra.mxu0 %v97
  %310 = vmatprep.subr.mxu0 0.0
  %311 = vmatpush2.msra.mxu0 %v96
  %312 = vmatprep.subr.mxu0 0.0
  %313 = vmatpush2.msra.mxu0 %v95
  %314 = vmatprep.subr.mxu0 0.0
  %315 = vmatpush2.msra.mxu0 %v94
  %316 = vmatprep.subr.mxu0 0.0
  %317 = vmatpush2.msra.mxu0 %v93
  %318 = vmatprep.subr.mxu0 0.0
  %319 = vmatpush2.msra.mxu0 %v92
  %320 = vmatprep.subr.mxu0 0.0
  %321 = vmatpush2.msra.mxu0 %v91
  %322 = vmatprep.subr.mxu0 0.0
  %323 = vmatpush2.msra.mxu0 %v90
  %324 = vmatprep.mubr.f32.mxu0 %v164
  %325 = vmatmul.mubr.f32.gmra.mxu0 %v162
  %v326 = vpop.f32.mrf.mxu0
  %v327 = vadd.f32 %v257, %v326
  %v328 = vpop.f32.mrf.mxu0
  %329 = vdwg.mxu0
  %330 = vmatprep.subr.mxu0 0.0
  %331 = vmatpush1.msra.mxu0 %v121
  %332 = vmatprep.subr.mxu0 0.0
  %333 = vmatpush1.msra.mxu0 %v120
  %334 = vmatprep.subr.mxu0 0.0
  %335 = vmatpush1.msra.mxu0 %v119
  %336 = vmatprep.subr.mxu0 0.0
  %337 = vmatpush1.msra.mxu0 %v118
  %338 = vmatprep.subr.mxu0 0.0
  %339 = vmatpush1.msra.mxu0 %v117
  %340 = vmatprep.subr.mxu0 0.0
  %341 = vmatpush1.msra.mxu0 %v116
  %342 = vmatprep.subr.mxu0 0.0
  %343 = vmatpush1.msra.mxu0 %v115
  %344 = vmatprep.subr.mxu0 0.0
  %345 = vmatpush1.msra.mxu0 %v114
  %346 = vmatprep.subr.mxu0 0.0
  %347 = vmatpush1.msra.mxu0 %v113
  %348 = vmatprep.subr.mxu0 0.0
  %349 = vmatpush1.msra.mxu0 %v112
  %350 = vmatprep.subr.mxu0 0.0
  %351 = vmatpush1.msra.mxu0 %v111
  %352 = vmatprep.subr.mxu0 0.0
  %353 = vmatpush1.msra.mxu0 %v110
  %354 = vmatprep.subr.mxu0 0.0
  %355 = vmatpush1.msra.mxu0 %v109
  %356 = vmatprep.subr.mxu0 0.0
  %357 = vmatpush1.msra.mxu0 %v108
  %358 = vmatprep.subr.mxu0 0.0
  %359 = vmatpush1.msra.mxu0 %v107
  %360 = vmatprep.subr.mxu0 0.0
  %361 = vmatpush1.msra.mxu0 %v106
  %362 = vmatprep.subr.mxu0 0.0
  %363 = vmatpush2.msra.mxu0 %v137
  %364 = vmatprep.subr.mxu0 0.0
  %365 = vmatpush2.msra.mxu0 %v136
  %366 = vmatprep.subr.mxu0 0.0
  %367 = vmatpush2.msra.mxu0 %v135
  %368 = vmatprep.subr.mxu0 0.0
  %369 = vmatpush2.msra.mxu0 %v134
  %370 = vmatprep.subr.mxu0 0.0
  %371 = vmatpush2.msra.mxu0 %v133
  %372 = vmatprep.subr.mxu0 0.0
  %373 = vmatpush2.msra.mxu0 %v132
  %374 = vmatprep.subr.mxu0 0.0
  %375 = vmatpush2.msra.mxu0 %v131
  %376 = vmatprep.subr.mxu0 0.0
  %377 = vmatpush2.msra.mxu0 %v130
  %378 = vmatprep.subr.mxu0 0.0
  %379 = vmatpush2.msra.mxu0 %v129
  %380 = vmatprep.subr.mxu0 0.0
  %381 = vmatpush2.msra.mxu0 %v128
  %382 = vmatprep.subr.mxu0 0.0
  %383 = vmatpush2.msra.mxu0 %v127
  %384 = vmatprep.subr.mxu0 0.0
  %385 = vmatpush2.msra.mxu0 %v126
  %386 = vmatprep.subr.mxu0 0.0
  %387 = vmatpush2.msra.mxu0 %v125
  %388 = vmatprep.subr.mxu0 0.0
  %389 = vmatpush2.msra.mxu0 %v124
  %390 = vmatprep.subr.mxu0 0.0
  %391 = vmatpush2.msra.mxu0 %v123
  %392 = vmatprep.subr.mxu0 0.0
  %393 = vmatpush2.msra.mxu0 %v122
  %394 = vmatprep.mubr.f32.mxu0 %v180
  %395 = vmatmul.mubr.f32.gmra.mxu0 %v172
  %v396 = vpop.f32.mrf.mxu0
  %v397 = vadd.f32 %v327, %v396
  %v398 = vpop.f32.mrf.mxu0
  %399 = vdwg.mxu0
  %400 = vmatprep.subr.mxu0 0.0
  %401 = vmatpush1.msra.mxu0 0.0
  %402 = vmatprep.subr.mxu0 0.0
  %403 = vmatpush1.msra.mxu0 0.0
  %404 = vmatprep.subr.mxu0 0.0
  %405 = vmatpush1.msra.mxu0 0.0
  %406 = vmatprep.subr.mxu0 0.0
  %407 = vmatpush1.msra.mxu0 0.0
  %408 = vmatprep.subr.mxu0 0.0
  %409 = vmatpush1.msra.mxu0 0.0
  %410 = vmatprep.subr.mxu0 0.0
  %411 = vmatpush1.msra.mxu0 0.0
  %412 = vmatprep.subr.mxu0 0.0
  %413 = vmatpush1.msra.mxu0 0.0
  %414 = vmatprep.subr.mxu0 0.0
  %415 = vmatpush1.msra.mxu0 0.0
  %416 = vmatprep.subr.mxu0 0.0
  %417 = vmatpush1.msra.mxu0 0.0
  %418 = vmatprep.subr.mxu0 0.0
  %419 = vmatpush1.msra.mxu0 0.0
  %420 = vmatprep.subr.mxu0 0.0
  %421 = vmatpush1.msra.mxu0 0.0
  %422 = vmatprep.subr.mxu0 0.0
  %423 = vmatpush1.msra.mxu0 0.0
  %424 = vmatprep.subr.mxu0 0.0
  %425 = vmatpush1.msra.mxu0 0.0
  %426 = vmatprep.subr.mxu0 0.0
  %427 = vmatpush1.msra.mxu0 0.0
  %428 = vmatprep.subr.mxu0 0.0
  %429 = vmatpush1.msra.mxu0 %v139
  %430 = vmatprep.subr.mxu0 0.0
  %431 = vmatpush1.msra.mxu0 %v138
  %432 = vmatprep.subr.mxu0 0.0
  %433 = vmatpush2.msra.mxu0 0.0
  %434 = vmatprep.subr.mxu0 0.0
  %435 = vmatpush2.msra.mxu0 0.0
  %436 = vmatprep.subr.mxu0 0.0
  %437 = vmatpush2.msra.mxu0 0.0
  %438 = vmatprep.subr.mxu0 0.0
  %439 = vmatpush2.msra.mxu0 0.0
  %440 = vmatprep.subr.mxu0 0.0
  %441 = vmatpush2.msra.mxu0 0.0
  %442 = vmatprep.subr.mxu0 0.0
  %443 = vmatpush2.msra.mxu0 0.0
  %444 = vmatprep.subr.mxu0 0.0
  %445 = vmatpush2.msra.mxu0 0.0
  %446 = vmatprep.subr.mxu0 0.0
  %447 = vmatpush2.msra.mxu0 0.0
  %448 = vmatprep.subr.mxu0 0.0
  %449 = vmatpush2.msra.mxu0 0.0
  %450 = vmatprep.subr.mxu0 0.0
  %451 = vmatpush2.msra.mxu0 0.0
  %452 = vmatprep.subr.mxu0 0.0
  %453 = vmatpush2.msra.mxu0 0.0
  %454 = vmatprep.subr.mxu0 0.0
  %455 = vmatpush2.msra.mxu0 0.0
  %456 = vmatprep.subr.mxu0 0.0
  %457 = vmatpush2.msra.mxu0 0.0
  %458 = vmatprep.subr.mxu0 0.0
  %459 = vmatpush2.msra.mxu0 0.0
  %460 = vmatprep.subr.mxu0 0.0
  %461 = vmatpush2.msra.mxu0 0.0
  %462 = vmatprep.subr.mxu0 0.0
  %463 = vmatpush2.msra.mxu0 0.0
  %464 = vmatprep.mubr.f32.mxu0 0.0
  %465 = vmatmul.mubr.f32.gmra.mxu0 %v188
  %v466 = vpop.f32.mrf.mxu0
  %v467 = vadd.f32 %v397, %v466
  %v468 = vpop.f32.mrf.mxu0
  %469 = vdwg.mxu0
  %v470 = vmax.f32 %v467, 0.0
  %v471 = vld [vmem:[%s3] sm:$0xff]
  %v472 = vld [vmem:[%s3 + $0x8] sm:$0xff]
  %v473 = vld [vmem:[%s3 + $0x10] sm:$0xff]
  %v474 = vld [vmem:[%s3 + $0x18] sm:$0xff]
  %v476 = vlaneseq
  %v477 = vshrl.u32 %v476, 7
  %v478 = vsub.s32 0, %v477
  %v479 = vrot.slane %v35, %v478
  %vm481 = vcmask 261120
  %v483 = vsel %vm481, %v470, 0
  %485 = vmatprep.subr.mxu0 0.0
  %486 = vmatpush1.msra.mxu0 0.0
  %487 = vmatprep.subr.mxu0 0.0
  %488 = vmatpush1.msra.mxu0 0.0
  %489 = vmatprep.subr.mxu0 0.0
  %490 = vmatpush1.msra.mxu0 0.0
  %491 = vmatprep.subr.mxu0 0.0
  %492 = vmatpush1.msra.mxu0 0.0
  %493 = vmatprep.subr.mxu0 0.0
  %494 = vmatpush1.msra.mxu0 0.0
  %495 = vmatprep.subr.mxu0 0.0
  %496 = vmatpush1.msra.mxu0 0.0
  %497 = vmatprep.subr.mxu0 0.0
  %498 = vmatpush1.msra.mxu0 0.0
  %499 = vmatprep.subr.mxu0 0.0
  %500 = vmatpush1.msra.mxu0 0.0
  %501 = vmatprep.subr.mxu0 0.0
  %502 = vmatpush1.msra.mxu0 0.0
  %503 = vmatprep.subr.mxu0 0.0
  %504 = vmatpush1.msra.mxu0 0.0
  %505 = vmatprep.subr.mxu0 0.0
  %506 = vmatpush1.msra.mxu0 0.0
  %507 = vmatprep.subr.mxu0 0.0
  %508 = vmatpush1.msra.mxu0 0.0
  %509 = vmatprep.subr.mxu0 0.0
  %510 = vmatpush1.msra.mxu0 %v474
  %511 = vmatprep.subr.mxu0 0.0
  %512 = vmatpush1.msra.mxu0 %v473
  %513 = vmatprep.subr.mxu0 0.0
  %514 = vmatpush1.msra.mxu0 %v472
  %515 = vmatprep.subr.mxu0 0.0
  %516 = vmatpush1.msra.mxu0 %v471
  %517 = vmatprep.subr.mxu0 0.0
  %518 = vmatpush2.msra.mxu0 0.0
  %519 = vmatprep.subr.mxu0 0.0
  %520 = vmatpush2.msra.mxu0 0.0
  %521 = vmatprep.subr.mxu0 0.0
  %522 = vmatpush2.msra.mxu0 0.0
  %523 = vmatprep.subr.mxu0 0.0
  %524 = vmatpush2.msra.mxu0 0.0
  %525 = vmatprep.subr.mxu0 0.0
  %526 = vmatpush2.msra.mxu0 0.0
  %527 = vmatprep.subr.mxu0 0.0
  %528 = vmatpush2.msra.mxu0 0.0
  %529 = vmatprep.subr.mxu0 0.0
  %530 = vmatpush2.msra.mxu0 0.0
  %531 = vmatprep.subr.mxu0 0.0
  %532 = vmatpush2.msra.mxu0 0.0
  %533 = vmatprep.subr.mxu0 0.0
  %534 = vmatpush2.msra.mxu0 0.0
  %535 = vmatprep.subr.mxu0 0.0
  %536 = vmatpush2.msra.mxu0 0.0
  %537 = vmatprep.subr.mxu0 0.0
  %538 = vmatpush2.msra.mxu0 0.0
  %539 = vmatprep.subr.mxu0 0.0
  %540 = vmatpush2.msra.mxu0 0.0
  %541 = vmatprep.subr.mxu0 0.0
  %542 = vmatpush2.msra.mxu0 0.0
  %543 = vmatprep.subr.mxu0 0.0
  %544 = vmatpush2.msra.mxu0 0.0
  %545 = vmatprep.subr.mxu0 0.0
  %546 = vmatpush2.msra.mxu0 0.0
  %547 = vmatprep.subr.mxu0 0.0
  %548 = vmatpush2.msra.mxu0 0.0
  %549 = vmatprep.mubr.f32.mxu0 0.0
  %550 = vmatmul.mubr.f32.gmra.mxu0 %v483
  %v551 = vpop.f32.mrf.mxu0
  %v552 = vadd.f32 %v479, %v551
  %v553 = vpop.f32.mrf.mxu0
  %554 = vdwg.mxu0
  %v555 = vmax.f32 %v552, 0.0
  %v556 = vld [vmem:[%s4] sm:$0xff]
  %v557 = vld [vmem:[%s4 + $0x8] sm:$0xff]
  %v558 = vld [vmem:[%s4 + $0x10] sm:$0xff]
  %v559 = vld [vmem:[%s4 + $0x18] sm:$0xff]
  %v561 = vlaneseq
  %v562 = vshrl.u32 %v561, 7
  %v563 = vsub.s32 0, %v562
  %v564 = vrot.slane %v36, %v563
  %v567 = vsel %vm481, %v555, 0
  %569 = vmatprep.subr.mxu0 0.0
  %570 = vmatpush1.msra.mxu0 0.0
  %571 = vmatprep.subr.mxu0 0.0
  %572 = vmatpush1.msra.mxu0 0.0
  %573 = vmatprep.subr.mxu0 0.0
  %574 = vmatpush1.msra.mxu0 0.0
  %575 = vmatprep.subr.mxu0 0.0
  %576 = vmatpush1.msra.mxu0 0.0
  %577 = vmatprep.subr.mxu0 0.0
  %578 = vmatpush1.msra.mxu0 0.0
  %579 = vmatprep.subr.mxu0 0.0
  %580 = vmatpush1.msra.mxu0 0.0
  %581 = vmatprep.subr.mxu0 0.0
  %582 = vmatpush1.msra.mxu0 0.0
  %583 = vmatprep.subr.mxu0 0.0
  %584 = vmatpush1.msra.mxu0 0.0
  %585 = vmatprep.subr.mxu0 0.0
  %586 = vmatpush1.msra.mxu0 0.0
  %587 = vmatprep.subr.mxu0 0.0
  %588 = vmatpush1.msra.mxu0 0.0
  %589 = vmatprep.subr.mxu0 0.0
  %590 = vmatpush1.msra.mxu0 0.0
  %591 = vmatprep.subr.mxu0 0.0
  %592 = vmatpush1.msra.mxu0 0.0
  %593 = vmatprep.subr.mxu0 0.0
  %594 = vmatpush1.msra.mxu0 %v559
  %595 = vmatprep.subr.mxu0 0.0
  %596 = vmatpush1.msra.mxu0 %v558
  %597 = vmatprep.subr.mxu0 0.0
  %598 = vmatpush1.msra.mxu0 %v557
  %599 = vmatprep.subr.mxu0 0.0
  %600 = vmatpush1.msra.mxu0 %v556
  %601 = vmatprep.subr.mxu0 0.0
  %602 = vmatpush2.msra.mxu0 0.0
  %603 = vmatprep.subr.mxu0 0.0
  %604 = vmatpush2.msra.mxu0 0.0
  %605 = vmatprep.subr.mxu0 0.0
  %606 = vmatpush2.msra.mxu0 0.0
  %607 = vmatprep.subr.mxu0 0.0
  %608 = vmatpush2.msra.mxu0 0.0
  %609 = vmatprep.subr.mxu0 0.0
  %610 = vmatpush2.msra.mxu0 0.0
  %611 = vmatprep.subr.mxu0 0.0
  %612 = vmatpush2.msra.mxu0 0.0
  %613 = vmatprep.subr.mxu0 0.0
  %614 = vmatpush2.msra.mxu0 0.0
  %615 = vmatprep.subr.mxu0 0.0
  %616 = vmatpush2.msra.mxu0 0.0
  %617 = vmatprep.subr.mxu0 0.0
  %618 = vmatpush2.msra.mxu0 0.0
  %619 = vmatprep.subr.mxu0 0.0
  %620 = vmatpush2.msra.mxu0 0.0
  %621 = vmatprep.subr.mxu0 0.0
  %622 = vmatpush2.msra.mxu0 0.0
  %623 = vmatprep.subr.mxu0 0.0
  %624 = vmatpush2.msra.mxu0 0.0
  %625 = vmatprep.subr.mxu0 0.0
  %626 = vmatpush2.msra.mxu0 0.0
  %627 = vmatprep.subr.mxu0 0.0
  %628 = vmatpush2.msra.mxu0 0.0
  %629 = vmatprep.subr.mxu0 0.0
  %630 = vmatpush2.msra.mxu0 0.0
  %631 = vmatprep.subr.mxu0 0.0
  %632 = vmatpush2.msra.mxu0 0.0
  %633 = vmatprep.mubr.f32.mxu0 0.0
  %634 = vmatmul.mubr.f32.gmra.mxu0 %v567
  %v635 = vpop.f32.mrf.mxu0
  %v636 = vadd.f32 %v564, %v635
  %v637 = vpop.f32.mrf.mxu0
  %638 = vdwg.mxu0
  %v639 = vlaneseq
  %v640 = vand.u32 %v639, 127
  %vm641 = vcmp.lt.s32.totalorder %v640, 8
  %vm642 = vcmp.ge.s32.totalorder %v640, 8
  %vm643 = vcmp.lt.s32.totalorder %v640, 16
  %vm644 = vmand %vm642, %vm643
  %v645 = vmax.f32 %v636, -1000000.0
  %v646 = vsel %vm644, %v645, %v636
  %647 = vst [vmem:[%s10] sm:$0x3] %v646
  %v648 = vmul.f32 %v646, 0.5
  %v649 = vmul.f32 %v648, 1.442695
  %v650 = vpow.pop %v649
  %v651 = vsel %vm644, %v650, 0.0
  %v652 = vsel %vm641, %v646, 0.0
  %v653 = vld [vmem:[%s1] sm:$0x3]
  %v654 = vmul.f32 %v653, %v651
  %v655 = vadd.f32 %v652, %v654
  %v656 = vld [vmem:[%s5] sm:$0xff]
  %v657 = vld [vmem:[%s5 + $0x8] sm:$0xff]
  %v658 = vld [vmem:[%s5 + $0x10] sm:$0xff]
  %v659 = vld [vmem:[%s5 + $0x18] sm:$0xff]
  %v660 = vld [vmem:[%s5 + $0x20] sm:$0xff]
  %v661 = vld [vmem:[%s5 + $0x28] sm:$0xff]
  %v662 = vld [vmem:[%s5 + $0x30] sm:$0xff]
  %v663 = vld [vmem:[%s5 + $0x38] sm:$0xff]
  %v664 = vld [vmem:[%s5 + $0x40] sm:$0xff]
  %v665 = vld [vmem:[%s5 + $0x48] sm:$0xff]
  %v666 = vld [vmem:[%s5 + $0x50] sm:$0xff]
  %v667 = vld [vmem:[%s5 + $0x58] sm:$0xff]
  %v668 = vld [vmem:[%s5 + $0x60] sm:$0xff]
  %v669 = vld [vmem:[%s5 + $0x68] sm:$0xff]
  %v670 = vld [vmem:[%s5 + $0x70] sm:$0xff]
  %v671 = vld [vmem:[%s5 + $0x78] sm:$0xff]
  %v673 = vlaneseq
  %v674 = vshrl.u32 %v673, 7
  %v675 = vsub.s32 0, %v674
  %v676 = vrot.slane %v37, %v675
  %678 = vmatprep.subr.mxu0 0.0
  %679 = vmatpush1.msra.mxu0 %v671
  %680 = vmatprep.subr.mxu0 0.0
  %681 = vmatpush1.msra.mxu0 %v670
  %682 = vmatprep.subr.mxu0 0.0
  %683 = vmatpush1.msra.mxu0 %v669
  %684 = vmatprep.subr.mxu0 0.0
  %685 = vmatpush1.msra.mxu0 %v668
  %686 = vmatprep.subr.mxu0 0.0
  %687 = vmatpush1.msra.mxu0 %v667
  %688 = vmatprep.subr.mxu0 0.0
  %689 = vmatpush1.msra.mxu0 %v666
  %690 = vmatprep.subr.mxu0 0.0
  %691 = vmatpush1.msra.mxu0 %v665
  %692 = vmatprep.subr.mxu0 0.0
  %693 = vmatpush1.msra.mxu0 %v664
  %694 = vmatprep.subr.mxu0 0.0
  %695 = vmatpush1.msra.mxu0 %v663
  %696 = vmatprep.subr.mxu0 0.0
  %697 = vmatpush1.msra.mxu0 %v662
  %698 = vmatprep.subr.mxu0 0.0
  %699 = vmatpush1.msra.mxu0 %v661
  %700 = vmatprep.subr.mxu0 0.0
  %701 = vmatpush1.msra.mxu0 %v660
  %702 = vmatprep.subr.mxu0 0.0
  %703 = vmatpush1.msra.mxu0 %v659
  %704 = vmatprep.subr.mxu0 0.0
  %705 = vmatpush1.msra.mxu0 %v658
  %706 = vmatprep.subr.mxu0 0.0
  %707 = vmatpush1.msra.mxu0 %v657
  %708 = vmatprep.subr.mxu0 0.0
  %709 = vmatpush1.msra.mxu0 %v656
  %710 = vmatprep.subr.mxu0 0.0
  %711 = vmatpush2.msra.mxu0 0.0
  %712 = vmatprep.subr.mxu0 0.0
  %713 = vmatpush2.msra.mxu0 0.0
  %714 = vmatprep.subr.mxu0 0.0
  %715 = vmatpush2.msra.mxu0 0.0
  %716 = vmatprep.subr.mxu0 0.0
  %717 = vmatpush2.msra.mxu0 0.0
  %718 = vmatprep.subr.mxu0 0.0
  %719 = vmatpush2.msra.mxu0 0.0
  %720 = vmatprep.subr.mxu0 0.0
  %721 = vmatpush2.msra.mxu0 0.0
  %722 = vmatprep.subr.mxu0 0.0
  %723 = vmatpush2.msra.mxu0 0.0
  %724 = vmatprep.subr.mxu0 0.0
  %725 = vmatpush2.msra.mxu0 0.0
  %726 = vmatprep.subr.mxu0 0.0
  %727 = vmatpush2.msra.mxu0 0.0
  %728 = vmatprep.subr.mxu0 0.0
  %729 = vmatpush2.msra.mxu0 0.0
  %730 = vmatprep.subr.mxu0 0.0
  %731 = vmatpush2.msra.mxu0 0.0
  %732 = vmatprep.subr.mxu0 0.0
  %733 = vmatpush2.msra.mxu0 0.0
  %734 = vmatprep.subr.mxu0 0.0
  %735 = vmatpush2.msra.mxu0 0.0
  %736 = vmatprep.subr.mxu0 0.0
  %737 = vmatpush2.msra.mxu0 0.0
  %738 = vmatprep.subr.mxu0 0.0
  %739 = vmatpush2.msra.mxu0 0.0
  %740 = vmatprep.subr.mxu0 0.0
  %741 = vmatpush2.msra.mxu0 0.0
  %742 = vmatprep.mubr.f32.mxu0 0.0
  %743 = vmatmul.mubr.f32.gmra.mxu0 %v655
  %v744 = vpop.f32.mrf.mxu0
  %v745 = vadd.f32 %v676, %v744
  %v746 = vpop.f32.mrf.mxu0
  %747 = vdwg.mxu0
  %v748 = vmax.f32 %v745, 0.0
  %v749 = vld [vmem:[%s6] sm:$0xff]
  %v750 = vld [vmem:[%s6 + $0x8] sm:$0xff]
  %v751 = vld [vmem:[%s6 + $0x10] sm:$0xff]
  %v752 = vld [vmem:[%s6 + $0x18] sm:$0xff]
  %v754 = vlaneseq
  %v755 = vshrl.u32 %v754, 7
  %v756 = vsub.s32 0, %v755
  %v757 = vrot.slane %v38, %v756
  %v760 = vsel %vm481, %v748, 0
  %762 = vmatprep.subr.mxu0 0.0
  %763 = vmatpush1.msra.mxu0 0.0
  %764 = vmatprep.subr.mxu0 0.0
  %765 = vmatpush1.msra.mxu0 0.0
  %766 = vmatprep.subr.mxu0 0.0
  %767 = vmatpush1.msra.mxu0 0.0
  %768 = vmatprep.subr.mxu0 0.0
  %769 = vmatpush1.msra.mxu0 0.0
  %770 = vmatprep.subr.mxu0 0.0
  %771 = vmatpush1.msra.mxu0 0.0
  %772 = vmatprep.subr.mxu0 0.0
  %773 = vmatpush1.msra.mxu0 0.0
  %774 = vmatprep.subr.mxu0 0.0
  %775 = vmatpush1.msra.mxu0 0.0
  %776 = vmatprep.subr.mxu0 0.0
  %777 = vmatpush1.msra.mxu0 0.0
  %778 = vmatprep.subr.mxu0 0.0
  %779 = vmatpush1.msra.mxu0 0.0
  %780 = vmatprep.subr.mxu0 0.0
  %781 = vmatpush1.msra.mxu0 0.0
  %782 = vmatprep.subr.mxu0 0.0
  %783 = vmatpush1.msra.mxu0 0.0
  %784 = vmatprep.subr.mxu0 0.0
  %785 = vmatpush1.msra.mxu0 0.0
  %786 = vmatprep.subr.mxu0 0.0
  %787 = vmatpush1.msra.mxu0 %v752
  %788 = vmatprep.subr.mxu0 0.0
  %789 = vmatpush1.msra.mxu0 %v751
  %790 = vmatprep.subr.mxu0 0.0
  %791 = vmatpush1.msra.mxu0 %v750
  %792 = vmatprep.subr.mxu0 0.0
  %793 = vmatpush1.msra.mxu0 %v749
  %794 = vmatprep.subr.mxu0 0.0
  %795 = vmatpush2.msra.mxu0 0.0
  %796 = vmatprep.subr.mxu0 0.0
  %797 = vmatpush2.msra.mxu0 0.0
  %798 = vmatprep.subr.mxu0 0.0
  %799 = vmatpush2.msra.mxu0 0.0
  %800 = vmatprep.subr.mxu0 0.0
  %801 = vmatpush2.msra.mxu0 0.0
  %802 = vmatprep.subr.mxu0 0.0
  %803 = vmatpush2.msra.mxu0 0.0
  %804 = vmatprep.subr.mxu0 0.0
  %805 = vmatpush2.msra.mxu0 0.0
  %806 = vmatprep.subr.mxu0 0.0
  %807 = vmatpush2.msra.mxu0 0.0
  %808 = vmatprep.subr.mxu0 0.0
  %809 = vmatpush2.msra.mxu0 0.0
  %810 = vmatprep.subr.mxu0 0.0
  %811 = vmatpush2.msra.mxu0 0.0
  %812 = vmatprep.subr.mxu0 0.0
  %813 = vmatpush2.msra.mxu0 0.0
  %814 = vmatprep.subr.mxu0 0.0
  %815 = vmatpush2.msra.mxu0 0.0
  %816 = vmatprep.subr.mxu0 0.0
  %817 = vmatpush2.msra.mxu0 0.0
  %818 = vmatprep.subr.mxu0 0.0
  %819 = vmatpush2.msra.mxu0 0.0
  %820 = vmatprep.subr.mxu0 0.0
  %821 = vmatpush2.msra.mxu0 0.0
  %822 = vmatprep.subr.mxu0 0.0
  %823 = vmatpush2.msra.mxu0 0.0
  %824 = vmatprep.subr.mxu0 0.0
  %825 = vmatpush2.msra.mxu0 0.0
  %826 = vmatprep.mubr.f32.mxu0 0.0
  %827 = vmatmul.mubr.f32.gmra.mxu0 %v760
  %v828 = vpop.f32.mrf.mxu0
  %v829 = vadd.f32 %v757, %v828
  %v830 = vpop.f32.mrf.mxu0
  %831 = vdwg.mxu0
  %v832 = vmax.f32 %v829, 0.0
  %v833 = vld [vmem:[%s7] sm:$0xff]
  %v834 = vld [vmem:[%s7 + $0x8] sm:$0xff]
  %v835 = vld [vmem:[%s7 + $0x10] sm:$0xff]
  %v836 = vld [vmem:[%s7 + $0x18] sm:$0xff]
  %v837 = vld [vmem:[%s7 + $0x20] sm:$0xff]
  %v838 = vld [vmem:[%s7 + $0x28] sm:$0xff]
  %v839 = vld [vmem:[%s7 + $0x30] sm:$0xff]
  %v840 = vld [vmem:[%s7 + $0x38] sm:$0xff]
  %v841 = vld [vmem:[%s7 + $0x40] sm:$0xff]
  %v842 = vld [vmem:[%s7 + $0x48] sm:$0xff]
  %v843 = vld [vmem:[%s7 + $0x50] sm:$0xff]
  %v844 = vld [vmem:[%s7 + $0x58] sm:$0xff]
  %v845 = vld [vmem:[%s7 + $0x60] sm:$0xff]
  %v846 = vld [vmem:[%s7 + $0x68] sm:$0xff]
  %v847 = vld [vmem:[%s7 + $0x70] sm:$0xff]
  %v848 = vld [vmem:[%s7 + $0x78] sm:$0xff]
  %v849 = vld [vmem:[%s7 + $0x80] sm:$0xff]
  %v850 = vld [vmem:[%s7 + $0x88] sm:$0xff]
  %v851 = vld [vmem:[%s7 + $0x90] sm:$0xff]
  %v852 = vld [vmem:[%s7 + $0x98] sm:$0xff]
  %v853 = vld [vmem:[%s7 + $0xa0] sm:$0xff]
  %v854 = vld [vmem:[%s7 + $0xa8] sm:$0xff]
  %v855 = vld [vmem:[%s7 + $0xb0] sm:$0xff]
  %v856 = vld [vmem:[%s7 + $0xb8] sm:$0xff]
  %v857 = vld [vmem:[%s7 + $0xc0] sm:$0xff]
  %v858 = vld [vmem:[%s7 + $0xc8] sm:$0xff]
  %v859 = vld [vmem:[%s7 + $0xd0] sm:$0xff]
  %v860 = vld [vmem:[%s7 + $0xd8] sm:$0xff]
  %v862 = vlaneseq
  %v863 = vshrl.u32 %v862, 7
  %v864 = vsub.s32 0, %v863
  %v865 = vrot.slane %v39, %v864
  %v866 = vlaneseq
  %v867 = vshrl.u32 %v866, 7
  %v868 = vsub.s32 1, %v867
  %v869 = vrot.slane %v39, %v868
  %v870 = vlaneseq
  %v871 = vshrl.u32 %v870, 7
  %v872 = vsub.s32 2, %v871
  %v873 = vrot.slane %v39, %v872
  %v874 = vlaneseq
  %v875 = vshrl.u32 %v874, 7
  %v876 = vsub.s32 3, %v875
  %v877 = vrot.slane %v39, %v876
  %v878 = vlaneseq
  %v879 = vshrl.u32 %v878, 7
  %v880 = vsub.s32 4, %v879
  %v881 = vrot.slane %v39, %v880
  %v882 = vlaneseq
  %v883 = vshrl.u32 %v882, 7
  %v884 = vsub.s32 5, %v883
  %v885 = vrot.slane %v39, %v884
  %v886 = vlaneseq
  %v887 = vshrl.u32 %v886, 7
  %v888 = vsub.s32 6, %v887
  %v889 = vrot.slane %v39, %v888
  %v898 = vsel %vm481, %v832, 0
  %900 = vmatprep.subr.mxu0 0.0
  %901 = vmatpush1.msra.mxu0 0.0
  %902 = vmatprep.subr.mxu0 0.0
  %903 = vmatpush1.msra.mxu0 0.0
  %904 = vmatprep.subr.mxu0 0.0
  %905 = vmatpush1.msra.mxu0 0.0
  %906 = vmatprep.subr.mxu0 0.0
  %907 = vmatpush1.msra.mxu0 0.0
  %908 = vmatprep.subr.mxu0 0.0
  %909 = vmatpush1.msra.mxu0 0.0
  %910 = vmatprep.subr.mxu0 0.0
  %911 = vmatpush1.msra.mxu0 0.0
  %912 = vmatprep.subr.mxu0 0.0
  %913 = vmatpush1.msra.mxu0 0.0
  %914 = vmatprep.subr.mxu0 0.0
  %915 = vmatpush1.msra.mxu0 0.0
  %916 = vmatprep.subr.mxu0 0.0
  %917 = vmatpush1.msra.mxu0 0.0
  %918 = vmatprep.subr.mxu0 0.0
  %919 = vmatpush1.msra.mxu0 0.0
  %920 = vmatprep.subr.mxu0 0.0
  %921 = vmatpush1.msra.mxu0 0.0
  %922 = vmatprep.subr.mxu0 0.0
  %923 = vmatpush1.msra.mxu0 0.0
  %924 = vmatprep.subr.mxu0 %v855
  %925 = vmatpush1.msra.mxu0 %v854
  %926 = vmatprep.subr.mxu0 %v848
  %927 = vmatpush1.msra.mxu0 %v847
  %928 = vmatprep.subr.mxu0 %v841
  %929 = vmatpush1.msra.mxu0 %v840
  %930 = vmatprep.subr.mxu0 %v834
  %931 = vmatpush1.msra.mxu0 %v833
  %932 = vmatprep.subr.mxu0 0.0
  %933 = vmatpush2.msra.mxu0 0.0
  %934 = vmatprep.subr.mxu0 0.0
  %935 = vmatpush2.msra.mxu0 0.0
  %936 = vmatprep.subr.mxu0 0.0
  %937 = vmatpush2.msra.mxu0 0.0
  %938 = vmatprep.subr.mxu0 0.0
  %939 = vmatpush2.msra.mxu0 0.0
  %940 = vmatprep.subr.mxu0 0.0
  %941 = vmatpush2.msra.mxu0 0.0
  %942 = vmatprep.subr.mxu0 0.0
  %943 = vmatpush2.msra.mxu0 0.0
  %944 = vmatprep.subr.mxu0 0.0
  %945 = vmatpush2.msra.mxu0 0.0
  %946 = vmatprep.subr.mxu0 0.0
  %947 = vmatpush2.msra.mxu0 0.0
  %948 = vmatprep.subr.mxu0 0.0
  %949 = vmatpush2.msra.mxu0 0.0
  %950 = vmatprep.subr.mxu0 0.0
  %951 = vmatpush2.msra.mxu0 0.0
  %952 = vmatprep.subr.mxu0 0.0
  %953 = vmatpush2.msra.mxu0 0.0
  %954 = vmatprep.subr.mxu0 0.0
  %955 = vmatpush2.msra.mxu0 0.0
  %956 = vmatprep.subr.mxu0 0.0
  %957 = vmatpush2.msra.mxu0 0.0
  %958 = vmatprep.subr.mxu0 0.0
  %959 = vmatpush2.msra.mxu0 0.0
  %960 = vmatprep.subr.mxu0 0.0
  %961 = vmatpush2.msra.mxu0 0.0
  %962 = vmatprep.subr.mxu0 0.0
  %963 = vmatpush2.msra.mxu0 0.0
  %964 = vmatprep.mubr.f32.mxu0 0.0
  %965 = vmatmul.mubr.f32.gmra.mxu0 %v898
  %v966 = vpop.f32.mrf.mxu0
  %v967 = vadd.f32 %v865, %v966
  %v968 = vpop.f32.mrf.mxu0
  %v969 = vadd.f32 %v869, %v968
  %970 = vdwg.mxu0
  %971 = vmatprep.subr.mxu0 0.0
  %972 = vmatpush1.msra.mxu0 0.0
  %973 = vmatprep.subr.mxu0 0.0
  %974 = vmatpush1.msra.mxu0 0.0
  %975 = vmatprep.subr.mxu0 0.0
  %976 = vmatpush1.msra.mxu0 0.0
  %977 = vmatprep.subr.mxu0 0.0
  %978 = vmatpush1.msra.mxu0 0.0
  %979 = vmatprep.subr.mxu0 0.0
  %980 = vmatpush1.msra.mxu0 0.0
  %981 = vmatprep.subr.mxu0 0.0
  %982 = vmatpush1.msra.mxu0 0.0
  %983 = vmatprep.subr.mxu0 0.0
  %984 = vmatpush1.msra.mxu0 0.0
  %985 = vmatprep.subr.mxu0 0.0
  %986 = vmatpush1.msra.mxu0 0.0
  %987 = vmatprep.subr.mxu0 0.0
  %988 = vmatpush1.msra.mxu0 0.0
  %989 = vmatprep.subr.mxu0 0.0
  %990 = vmatpush1.msra.mxu0 0.0
  %991 = vmatprep.subr.mxu0 0.0
  %992 = vmatpush1.msra.mxu0 0.0
  %993 = vmatprep.subr.mxu0 0.0
  %994 = vmatpush1.msra.mxu0 0.0
  %995 = vmatprep.subr.mxu0 %v857
  %996 = vmatpush1.msra.mxu0 %v856
  %997 = vmatprep.subr.mxu0 %v850
  %998 = vmatpush1.msra.mxu0 %v849
  %999 = vmatprep.subr.mxu0 %v843
  %1000 = vmatpush1.msra.mxu0 %v842
  %1001 = vmatprep.subr.mxu0 %v836
  %1002 = vmatpush1.msra.mxu0 %v835
  %1003 = vmatprep.subr.mxu0 0.0
  %1004 = vmatpush2.msra.mxu0 0.0
  %1005 = vmatprep.subr.mxu0 0.0
  %1006 = vmatpush2.msra.mxu0 0.0
  %1007 = vmatprep.subr.mxu0 0.0
  %1008 = vmatpush2.msra.mxu0 0.0
  %1009 = vmatprep.subr.mxu0 0.0
  %1010 = vmatpush2.msra.mxu0 0.0
  %1011 = vmatprep.subr.mxu0 0.0
  %1012 = vmatpush2.msra.mxu0 0.0
  %1013 = vmatprep.subr.mxu0 0.0
  %1014 = vmatpush2.msra.mxu0 0.0
  %1015 = vmatprep.subr.mxu0 0.0
  %1016 = vmatpush2.msra.mxu0 0.0
  %1017 = vmatprep.subr.mxu0 0.0
  %1018 = vmatpush2.msra.mxu0 0.0
  %1019 = vmatprep.subr.mxu0 0.0
  %1020 = vmatpush2.msra.mxu0 0.0
  %1021 = vmatprep.subr.mxu0 0.0
  %1022 = vmatpush2.msra.mxu0 0.0
  %1023 = vmatprep.subr.mxu0 0.0
  %1024 = vmatpush2.msra.mxu0 0.0
  %1025 = vmatprep.subr.mxu0 0.0
  %1026 = vmatpush2.msra.mxu0 0.0
  %1027 = vmatprep.subr.mxu0 0.0
  %1028 = vmatpush2.msra.mxu0 0.0
  %1029 = vmatprep.subr.mxu0 0.0
  %1030 = vmatpush2.msra.mxu0 0.0
  %1031 = vmatprep.subr.mxu0 0.0
  %1032 = vmatpush2.msra.mxu0 0.0
  %1033 = vmatprep.subr.mxu0 0.0
  %1034 = vmatpush2.msra.mxu0 0.0
  %1035 = vmatprep.mubr.f32.mxu0 0.0
  %1036 = vmatmul.mubr.f32.gmra.mxu0 %v898
  %v1037 = vpop.f32.mrf.mxu0
  %v1038 = vadd.f32 %v873, %v1037
  %v1039 = vpop.f32.mrf.mxu0
  %v1040 = vadd.f32 %v877, %v1039
  %1041 = vdwg.mxu0
  %1042 = vmatprep.subr.mxu0 0.0
  %1043 = vmatpush1.msra.mxu0 0.0
  %1044 = vmatprep.subr.mxu0 0.0
  %1045 = vmatpush1.msra.mxu0 0.0
  %1046 = vmatprep.subr.mxu0 0.0
  %1047 = vmatpush1.msra.mxu0 0.0
  %1048 = vmatprep.subr.mxu0 0.0
  %1049 = vmatpush1.msra.mxu0 0.0
  %1050 = vmatprep.subr.mxu0 0.0
  %1051 = vmatpush1.msra.mxu0 0.0
  %1052 = vmatprep.subr.mxu0 0.0
  %1053 = vmatpush1.msra.mxu0 0.0
  %1054 = vmatprep.subr.mxu0 0.0
  %1055 = vmatpush1.msra.mxu0 0.0
  %1056 = vmatprep.subr.mxu0 0.0
  %1057 = vmatpush1.msra.mxu0 0.0
  %1058 = vmatprep.subr.mxu0 0.0
  %1059 = vmatpush1.msra.mxu0 0.0
  %1060 = vmatprep.subr.mxu0 0.0
  %1061 = vmatpush1.msra.mxu0 0.0
  %1062 = vmatprep.subr.mxu0 0.0
  %1063 = vmatpush1.msra.mxu0 0.0
  %1064 = vmatprep.subr.mxu0 0.0
  %1065 = vmatpush1.msra.mxu0 0.0
  %1066 = vmatprep.subr.mxu0 %v859
  %1067 = vmatpush1.msra.mxu0 %v858
  %1068 = vmatprep.subr.mxu0 %v852
  %1069 = vmatpush1.msra.mxu0 %v851
  %1070 = vmatprep.subr.mxu0 %v845
  %1071 = vmatpush1.msra.mxu0 %v844
  %1072 = vmatprep.subr.mxu0 %v838
  %1073 = vmatpush1.msra.mxu0 %v837
  %1074 = vmatprep.subr.mxu0 0.0
  %1075 = vmatpush2.msra.mxu0 0.0
  %1076 = vmatprep.subr.mxu0 0.0
  %1077 = vmatpush2.msra.mxu0 0.0
  %1078 = vmatprep.subr.mxu0 0.0
  %1079 = vmatpush2.msra.mxu0 0.0
  %1080 = vmatprep.subr.mxu0 0.0
  %1081 = vmatpush2.msra.mxu0 0.0
  %1082 = vmatprep.subr.mxu0 0.0
  %1083 = vmatpush2.msra.mxu0 0.0
  %1084 = vmatprep.subr.mxu0 0.0
  %1085 = vmatpush2.msra.mxu0 0.0
  %1086 = vmatprep.subr.mxu0 0.0
  %1087 = vmatpush2.msra.mxu0 0.0
  %1088 = vmatprep.subr.mxu0 0.0
  %1089 = vmatpush2.msra.mxu0 0.0
  %1090 = vmatprep.subr.mxu0 0.0
  %1091 = vmatpush2.msra.mxu0 0.0
  %1092 = vmatprep.subr.mxu0 0.0
  %1093 = vmatpush2.msra.mxu0 0.0
  %1094 = vmatprep.subr.mxu0 0.0
  %1095 = vmatpush2.msra.mxu0 0.0
  %1096 = vmatprep.subr.mxu0 0.0
  %1097 = vmatpush2.msra.mxu0 0.0
  %1098 = vmatprep.subr.mxu0 0.0
  %1099 = vmatpush2.msra.mxu0 0.0
  %1100 = vmatprep.subr.mxu0 0.0
  %1101 = vmatpush2.msra.mxu0 0.0
  %1102 = vmatprep.subr.mxu0 0.0
  %1103 = vmatpush2.msra.mxu0 0.0
  %1104 = vmatprep.subr.mxu0 0.0
  %1105 = vmatpush2.msra.mxu0 0.0
  %1106 = vmatprep.mubr.f32.mxu0 0.0
  %1107 = vmatmul.mubr.f32.gmra.mxu0 %v898
  %v1108 = vpop.f32.mrf.mxu0
  %v1109 = vadd.f32 %v881, %v1108
  %v1110 = vpop.f32.mrf.mxu0
  %v1111 = vadd.f32 %v885, %v1110
  %1112 = vdwg.mxu0
  %1113 = vmatprep.subr.mxu0 0.0
  %1114 = vmatpush1.msra.mxu0 0.0
  %1115 = vmatprep.subr.mxu0 0.0
  %1116 = vmatpush1.msra.mxu0 0.0
  %1117 = vmatprep.subr.mxu0 0.0
  %1118 = vmatpush1.msra.mxu0 0.0
  %1119 = vmatprep.subr.mxu0 0.0
  %1120 = vmatpush1.msra.mxu0 0.0
  %1121 = vmatprep.subr.mxu0 0.0
  %1122 = vmatpush1.msra.mxu0 0.0
  %1123 = vmatprep.subr.mxu0 0.0
  %1124 = vmatpush1.msra.mxu0 0.0
  %1125 = vmatprep.subr.mxu0 0.0
  %1126 = vmatpush1.msra.mxu0 0.0
  %1127 = vmatprep.subr.mxu0 0.0
  %1128 = vmatpush1.msra.mxu0 0.0
  %1129 = vmatprep.subr.mxu0 0.0
  %1130 = vmatpush1.msra.mxu0 0.0
  %1131 = vmatprep.subr.mxu0 0.0
  %1132 = vmatpush1.msra.mxu0 0.0
  %1133 = vmatprep.subr.mxu0 0.0
  %1134 = vmatpush1.msra.mxu0 0.0
  %1135 = vmatprep.subr.mxu0 0.0
  %1136 = vmatpush1.msra.mxu0 0.0
  %1137 = vmatprep.subr.mxu0 0.0
  %1138 = vmatpush1.msra.mxu0 %v860
  %1139 = vmatprep.subr.mxu0 0.0
  %1140 = vmatpush1.msra.mxu0 %v853
  %1141 = vmatprep.subr.mxu0 0.0
  %1142 = vmatpush1.msra.mxu0 %v846
  %1143 = vmatprep.subr.mxu0 0.0
  %1144 = vmatpush1.msra.mxu0 %v839
  %1145 = vmatprep.subr.mxu0 0.0
  %1146 = vmatpush2.msra.mxu0 0.0
  %1147 = vmatprep.subr.mxu0 0.0
  %1148 = vmatpush2.msra.mxu0 0.0
  %1149 = vmatprep.subr.mxu0 0.0
  %1150 = vmatpush2.msra.mxu0 0.0
  %1151 = vmatprep.subr.mxu0 0.0
  %1152 = vmatpush2.msra.mxu0 0.0
  %1153 = vmatprep.subr.mxu0 0.0
  %1154 = vmatpush2.msra.mxu0 0.0
  %1155 = vmatprep.subr.mxu0 0.0
  %1156 = vmatpush2.msra.mxu0 0.0
  %1157 = vmatprep.subr.mxu0 0.0
  %1158 = vmatpush2.msra.mxu0 0.0
  %1159 = vmatprep.subr.mxu0 0.0
  %1160 = vmatpush2.msra.mxu0 0.0
  %1161 = vmatprep.subr.mxu0 0.0
  %1162 = vmatpush2.msra.mxu0 0.0
  %1163 = vmatprep.subr.mxu0 0.0
  %1164 = vmatpush2.msra.mxu0 0.0
  %1165 = vmatprep.subr.mxu0 0.0
  %1166 = vmatpush2.msra.mxu0 0.0
  %1167 = vmatprep.subr.mxu0 0.0
  %1168 = vmatpush2.msra.mxu0 0.0
  %1169 = vmatprep.subr.mxu0 0.0
  %1170 = vmatpush2.msra.mxu0 0.0
  %1171 = vmatprep.subr.mxu0 0.0
  %1172 = vmatpush2.msra.mxu0 0.0
  %1173 = vmatprep.subr.mxu0 0.0
  %1174 = vmatpush2.msra.mxu0 0.0
  %1175 = vmatprep.subr.mxu0 0.0
  %1176 = vmatpush2.msra.mxu0 0.0
  %1177 = vmatprep.mubr.f32.mxu0 0.0
  %1178 = vmatmul.mubr.f32.gmra.mxu0 %v898
  %v1179 = vpop.f32.mrf.mxu0
  %v1180 = vadd.f32 %v889, %v1179
  %v1181 = vpop.f32.mrf.mxu0
  %1182 = vdwg.mxu0
  %v1183 = vsub.f32 0.0, %v967
  %v1184 = vsub.f32 0.0, %v969
  %v1185 = vsub.f32 0.0, %v1038
  %v1186 = vsub.f32 0.0, %v1040
  %v1187 = vsub.f32 0.0, %v1109
  %v1188 = vsub.f32 0.0, %v1111
  %v1189 = vsub.f32 0.0, %v1180
  %v1190 = vmul.f32 %v1183, 1.442695
  %v1191 = vpow.pop %v1190
  %v1192 = vmul.f32 %v1184, 1.442695
  %v1193 = vpow.pop %v1192
  %v1194 = vmul.f32 %v1185, 1.442695
  %v1195 = vpow.pop %v1194
  %v1196 = vmul.f32 %v1186, 1.442695
  %v1197 = vpow.pop %v1196
  %v1198 = vmul.f32 %v1187, 1.442695
  %v1199 = vpow.pop %v1198
  %v1200 = vmul.f32 %v1188, 1.442695
  %v1201 = vpow.pop %v1200
  %v1202 = vmul.f32 %v1189, 1.442695
  %v1203 = vpow.pop %v1202
  %v1204 = vadd.f32 %v1191, 1.0
  %v1205 = vadd.f32 %v1193, 1.0
  %v1206 = vadd.f32 %v1195, 1.0
  %v1207 = vadd.f32 %v1197, 1.0
  %v1208 = vadd.f32 %v1199, 1.0
  %v1209 = vadd.f32 %v1201, 1.0
  %v1210 = vadd.f32 %v1203, 1.0
  %v1211 = vrcp.pop %v1204
  %v1212 = vmul.f32 1.0, %v1211
  %v1213 = vrcp.pop %v1205
  %v1214 = vmul.f32 1.0, %v1213
  %v1215 = vrcp.pop %v1206
  %v1216 = vmul.f32 1.0, %v1215
  %v1217 = vrcp.pop %v1207
  %v1218 = vmul.f32 1.0, %v1217
  %v1219 = vrcp.pop %v1208
  %v1220 = vmul.f32 1.0, %v1219
  %v1221 = vrcp.pop %v1209
  %v1222 = vmul.f32 1.0, %v1221
  %v1223 = vrcp.pop %v1210
  %v1224 = vmul.f32 1.0, %v1223
  %v1232 = vcombine.low %v1212, %v1214
  %v1233 = vcombine.low %v1216, %v1218
  %v1235 = vunpack.c.l.s4 1983009808
  %v1236 = vunpack.c.0.s8 %v1235
  %v1237 = vlaneseq
  %v1238 = vshrl.u32 %v1237, 7
  %v1239 = vsub.s32 %v1236, %v1238
  %v1240 = vrot.slane %v1232, %v1239
  %v1242 = vunpack.c.l.s4 1983009808
  %v1243 = vunpack.c.0.s8 %v1242
  %v1244 = vlaneseq
  %v1245 = vshrl.u32 %v1244, 7
  %v1246 = vsub.s32 %v1243, %v1245
  %v1247 = vrot.slane %v1233, %v1246
  %v1248 = vcombine.low %v1240, %v1247
  %v1249 = vcombine.low %v1220, %v1222
  %v1251 = vunpack.c.l.s4 1983009808
  %v1252 = vunpack.c.0.s8 %v1251
  %v1253 = vlaneseq
  %v1254 = vshrl.u32 %v1253, 7
  %v1255 = vsub.s32 %v1252, %v1254
  %v1256 = vrot.slane %v1249, %v1255
  %v1258 = vunpack.c.l.s4 1983009808
  %v1259 = vunpack.c.0.s8 %v1258
  %v1260 = vlaneseq
  %v1261 = vshrl.u32 %v1260, 7
  %v1262 = vsub.s32 %v1259, %v1261
  %v1263 = vrot.slane %v1224, %v1262
  %v1264 = vcombine.low %v1256, %v1263
  %1267 = vst [vmem:[%s9] sm:$0xff] %v1248
  %vm1268 = vcmask 1041408
  %vm1269 = vcmask 1043458
  %vm1270 = vmor %vm1269, %vm1268
  %vm1271 = vcmask 128004
  %vm1272 = vmor %vm1271, %vm1270
  %1273 = vst.msk [vmem:[%s9 + $0x8] sm:$0x3f] %vm1272, %v1264
  // Predicated region
  $region38: #{vae_forward.1} parent=0 // pred_check
    _
  $region39: #{vae_forward.1} parent=0 // pred_check_branch
    %1275 = sbr.rel (0) target = $region41
  $region40: #{vae_forward.1} parent=0 // pred_region
    _
  $region41: #{vae_forward.1} parent=0 // pred_fallthru
    _
  // Predicated region
  $region42: #{vae_forward.1} parent=0 // pred_check
    _
  $region43: #{vae_forward.1} parent=0 // pred_check_branch
    %1277 = sbr.rel (0) target = $region45
  $region44: #{vae_forward.1} parent=0 // pred_region
    _
  $region45: #{vae_forward.1} parent=0 // pred_fallthru
    _
  // Predicated region
  $region46: #{vae_forward.1} parent=0 // pred_check
    _
  $region47: #{vae_forward.1} parent=0 // pred_check_branch
    %1279 = sbr.rel (0) target = $region49
  $region48: #{vae_forward.1} parent=0 // pred_region
    _
  $region49: #{vae_forward.1} parent=0 // pred_fallthru
    _
  // Predicated region
  $region50: #{vae_forward.1} parent=0 // pred_check
    _
  $region51: #{vae_forward.1} parent=0 // pred_check_branch
    %1281 = sbr.rel (0) target = $region53
  $region52: #{vae_forward.1} parent=0 // pred_region
    _
  $region53: #{vae_forward.1} parent=0 // pred_fallthru
    _

</llo_original>
